<compile_context>
chip_gen: v5e
topology: v5e:2x2
jax: 0.10.0
libtpu: 0.0.40
codegen_flags: <defaults>
</compile_context>

<pallas_src>
import functools

import jax
import jax.numpy as jnp
from jax.experimental import pallas as pl
from jax.experimental.pallas import tpu as pltpu

PROJ_DIM = 128        # cfg['MODEL']['PROJECTION']['DIM']
NUM_ANCHORS = 10
TEMPERATURE = 0.1     # cfg['MODEL']['PROJECTION']['TEMPERATURE']

VMEM = pltpu.MemorySpace.VMEM
SMEM = pltpu.MemorySpace.SMEM

VMEM_LIMIT = 32 * 1024 * 1024   # safe on v5e/v6e (128 MiB phys) and v7x (64 MiB phys)


def _vmem_specs(n):
    return [pl.BlockSpec(memory_space=VMEM) for _ in range(n)]


# ----------------------------- Pallas kernels ------------------------------

def mlp2_kernel(x_ref, w1_ref, b1_ref, w2_ref, b2_ref, o_ref):
    """rows @ W1 (tiny K -> VPU broadcast-FMAs) + b1 -> ReLU -> @ W2 (MXU) + b2."""
    x = x_ref[...]                              # (tm, K) f32
    w1 = w1_ref[...]                            # (K, H)  f32
    K = x.shape[1]
    h = b1_ref[...]                             # (1, H) broadcasts over rows
    # K is tiny (3): first layer as broadcast FMAs on the VALU slot instead of a
    # K=3 matmul that pads to 128/256-deep in the systolic array.
    for k in range(K):
        h = h + x[:, k:k + 1] * w1[k:k + 1, :]
    h = jnp.maximum(h, 0.0)
    o_ref[...] = (jnp.dot(h.astype(jnp.bfloat16), w2_ref[...],
                          preferred_element_type=jnp.float32) + b2_ref[...])


def pallas_mlp2(rows, w1_f32, b1_row, w2_bf16, b2_row, *, tile_rows=512):
    """Row-tiled fused MLP over (M, K) rows with VMEM-resident weights.

    No padding: grid = cdiv(M, tm) and Pallas masks the ragged final block.
    """
    M, K = rows.shape
    H = w1_f32.shape[1]
    N = w2_bf16.shape[1]
    tm = min(tile_rows, M)          # either full-M block or a multiple-of-8 tile
    return pl.pallas_call(
        mlp2_kernel,
        out_shape=jax.ShapeDtypeStruct((M, N), jnp.float32),
        grid=(pl.cdiv(M, tm),),
        in_specs=[
            pl.BlockSpec((tm, K), lambda i: (i, 0)),   # activations: tiled over rows
            pl.BlockSpec((K, H), lambda i: (0, 0)),    # weights: VMEM-resident
            pl.BlockSpec((1, H), lambda i: (0, 0)),
            pl.BlockSpec((H, N), lambda i: (0, 0)),
            pl.BlockSpec((1, N), lambda i: (0, 0)),
        ],
        out_specs=pl.BlockSpec((tm, N), lambda i: (i, 0)),
        compiler_params=pltpu.CompilerParams(
            dimension_semantics=("parallel",),          # megacore sharding when M is large
            vmem_limit_bytes=VMEM_LIMIT),
    )(rows, w1_f32, b1_row, w2_bf16, b2_row)


def ntxent_res_kernel(pooled3_ref, rw1_ref, rb1_ref, rw2_ref, rb2_ref,
                      zj_ref, za_ref, o_ref, *, temperature):
    """Fused: pipeline-1 projection head (M = B rows) + NT-Xent loss."""
    # ---- ResNet projection head (pooled image -> z_i), K=3 via VPU FMAs ----
    x = pooled3_ref[...]                               # (B, 3) f32
    rw1 = rw1_ref[...]                                 # (3, 512) f32
    h = rb1_ref[...]
    for k in range(x.shape[1]):
        h = h + x[:, k:k + 1] * rw1[k:k + 1, :]
    h = jnp.maximum(h, 0.0)
    zi = (jnp.dot(h.astype(jnp.bfloat16), rw2_ref[...],
                  preferred_element_type=jnp.float32) + rb2_ref[...])   # (B, D)

    zj = zj_ref[...]                                   # (B, D)
    za = za_ref[...]                                   # (B, A, D)

    # F.normalize (eps clamp) via EUP rsqrt
    eps2 = jnp.float32(1e-24)    # (1e-12)^2
    zi = zi * jax.lax.rsqrt(jnp.maximum(jnp.sum(zi * zi, axis=1, keepdims=True), eps2))
    zj = zj * jax.lax.rsqrt(jnp.maximum(jnp.sum(zj * zj, axis=1, keepdims=True), eps2))
    za = za * jax.lax.rsqrt(jnp.maximum(jnp.sum(za * za, axis=2, keepdims=True), eps2))

    inv_t = jnp.float32(1.0 / temperature)
    pos = jnp.sum(zi * zj, axis=1, keepdims=True) * inv_t                   # (B, 1)
    inter = jnp.dot(zi, zj.T, preferred_element_type=jnp.float32) * inv_t   # (B, B)
    # anchor sims on VPU multiply + lane reduce (avoids degenerate (1xD)@(DxA) matmuls)
    anch = jnp.sum(zi[:, None, :] * za, axis=-1) * inv_t                    # (B, A)

    B = zi.shape[0]
    row = jax.lax.broadcasted_iota(jnp.int32, (B, B), 0)
    col = jax.lax.broadcasted_iota(jnp.int32, (B, B), 1)
    inter = jnp.where(row == col, jnp.float32(-1e30), inter)  # masked_fill_(-inf)

    # cross_entropy with label 0 over logits [pos | inter | anch]
    m = jnp.maximum(pos, jnp.max(inter, axis=1, keepdims=True))
    m = jnp.maximum(m, jnp.max(anch, axis=1, keepdims=True))
    se = (jnp.exp(pos - m)
          + jnp.sum(jnp.exp(inter - m), axis=1, keepdims=True)
          + jnp.sum(jnp.exp(anch - m), axis=1, keepdims=True))
    loss_b = jnp.log(se) + m - pos                                          # (B, 1)
    o_ref[0, 0] = jnp.sum(loss_b) / B


def pallas_ntxent_loss(pooled3, rw1, rb1, rw2, rb2, z_j, z_a, temperature):
    out = pl.pallas_call(
        functools.partial(ntxent_res_kernel, temperature=temperature),
        out_shape=jax.ShapeDtypeStruct((1, 1), jnp.float32),
        in_specs=_vmem_specs(7),
        out_specs=pl.BlockSpec(memory_space=SMEM),
        compiler_params=pltpu.CompilerParams(vmem_limit_bytes=VMEM_LIMIT),
    )(pooled3, rw1, rb1, rw2, rb2, z_j, z_a)
    return out[0, 0]


# ------------------------------- glue (JAX) --------------------------------

def avg_pool_nchw(x, stride):
    B, C, H, W = x.shape
    return x.reshape(B, C, H // stride, stride, W // stride, stride).mean(axis=(3, 5))


def _fold_affine(w_a, b_a, w_b, b_b):
    """(x @ w_a + b_a) @ w_b + b_b  ==  x @ (w_a @ w_b) + (b_a @ w_b + b_b)."""
    return w_a @ w_b, b_a @ w_b + b_b


def init_params(key):
    ks = jax.random.split(key, 6)
    rnd = lambda k, shape, scale: jax.random.normal(k, shape, jnp.float32) * scale
    return {
        # TODO(synk): pretrained torchvision backbones (resnet50 / resnet_fpn_backbone)
        # are not reimplemented; deterministic pointwise affine stand-ins produce
        # feature maps with the correct shapes/dtypes instead.
        'res_bb_w': rnd(ks[0], (3, 2048), 0.2), 'res_bb_b': jnp.zeros((2048,), jnp.float32),
        'fpn_bb_w': rnd(ks[1], (3, 256), 0.2), 'fpn_bb_b': jnp.zeros((256,), jnp.float32),
        # pipeline1 projection head: Linear(2048,512) -> ReLU -> Linear(512,proj_dim)
        'p1_w1': rnd(ks[2], (2048, 512), 0.02), 'p1_b1': jnp.zeros((512,), jnp.float32),
        'p1_w2': rnd(ks[3], (512, PROJ_DIM), 0.04), 'p1_b2': jnp.zeros((PROJ_DIM,), jnp.float32),
        # pipeline2 proj head: Conv2d(256,512,1) -> ReLU -> Conv2d(512,proj_dim,1)
        'p2_w1': rnd(ks[4], (256, 512), 0.06), 'p2_b1': jnp.zeros((512,), jnp.float32),
        'p2_w2': rnd(ks[5], (512, PROJ_DIM), 0.04), 'p2_b2': jnp.zeros((PROJ_DIM,), jnp.float32),
    }


def fpn_sample_rows(x_j, crop_coords, key):
    """Gather-before-project: pos/neg cell selection depends only on geometry,
    so pick indices from `dists` and gather the pooled 3-channel rows per level.
    Returns rows in level-major order (matches the reference's stacking order)."""
    B, _, H_img, W_img = x_j.shape
    strides = (4, 8)  # stand-in pyramid levels

    pos_rows, neg_rows = [], []
    for li, stride in enumerate(strides):
        pooled = avg_pool_nchw(x_j, stride)                       # (B, 3, h, w)
        _, C, h, w = pooled.shape
        rows = pooled.transpose(0, 2, 3, 1).reshape(B, h * w, C)  # row order = y*w + x

        gy, gx = jnp.meshgrid(jnp.arange(h, dtype=jnp.float32),
                              jnp.arange(w, dtype=jnp.float32), indexing='ij')
        grid_flat = jnp.stack([gx, gy], axis=-1).reshape(h * w, 2)
        scale = W_img / h                                          # x.shape[-1] / h (ref quirk)
        grid_flat = grid_flat * scale

        y0, x0 = crop_coords[:, 0], crop_coords[:, 1]
        hc, wc = crop_coords[:, 2], crop_coords[:, 3]
        centers = jnp.stack([x0 + wc / 2, y0 + hc / 2], axis=-1)            # (B, 2)
        dists = jnp.sum((grid_flat[None] - centers[:, None, :]) ** 2, -1)   # (B, h*w)

        min_idx = jnp.argmin(dists, axis=1)                                 # (B,)
        pos_rows.append(
            jnp.take_along_axis(rows, min_idx[:, None, None], axis=1)[:, 0])  # (B, 3)

        min_dist = jnp.take_along_axis(dists, min_idx[:, None], axis=1)     # (B, 1)
        valid = dists > (min_dist * 2)
        # Gumbel top-k == uniform sample of NUM_ANCHORS valid cells w/o replacement,
        # matching torch.randperm(valid)[:num_anchors].
        # TODO(synk): torch's with-replacement fallback when valid cells < num_anchors
        # is not reproduced.
        kl = jax.random.fold_in(key, li)
        scores = jnp.where(valid, jax.random.gumbel(kl, dists.shape), -jnp.inf)
        _, neg_idx = jax.lax.top_k(scores, NUM_ANCHORS)                     # (B, A)
        neg_rows.append(jnp.take_along_axis(rows, neg_idx[:, :, None], axis=1))  # (B, A, 3)

    L = len(strides)
    pos3 = jnp.stack(pos_rows).reshape(L * B, 3)                  # level-major
    neg3 = jnp.stack(neg_rows).reshape(L * B * NUM_ANCHORS, 3)    # (l, b, a) order
    return pos3, neg3, L


def unsupervised_detector_forward(params, batch, key):
    x_i = batch['image_crop']
    x_j = batch['image_original']
    crop_coords = batch['crop_coords']
    B = x_i.shape[0]

    # Fold the affine backbone stand-ins into the first layer of each head and
    # pre-cast MXU weights once (no per-level/per-call re-casts).
    fpn_w1f, fpn_b1f = _fold_affine(params['fpn_bb_w'], params['fpn_bb_b'],
                                    params['p2_w1'], params['p2_b1'])   # (3,512), (512,)
    res_w1f, res_b1f = _fold_affine(params['res_bb_w'], params['res_bb_b'],
                                    params['p1_w1'], params['p1_b1'])   # (3,512), (512,)
    fpn_w2 = params['p2_w2'].astype(jnp.bfloat16)
    res_w2 = params['p1_w2'].astype(jnp.bfloat16)

    # --- pipeline 2: gather the selected cells, then ONE fused projection call ---
    pos3, neg3, L = fpn_sample_rows(x_j, crop_coords, key)
    rows3 = jnp.concatenate([pos3, neg3], axis=0)                 # (L*B*(1+A), 3)
    proj = pallas_mlp2(rows3, fpn_w1f, fpn_b1f.reshape(1, -1),
                       fpn_w2, params['p2_b2'].reshape(1, -1))    # (L*B*(1+A), D)

    n_pos = L * B
    pos_proj = proj[:n_pos]                                       # (L*B, D) level-major
    neg_proj = proj[n_pos:].reshape(L * B, NUM_ANCHORS, PROJ_DIM)
    # Reproduce the reference stack/view/mean exactly (level-major order; this
    # mixes batch samples across levels, as the PyTorch code does).
    z_j = pos_proj.reshape(B, -1, PROJ_DIM).mean(axis=1)                       # (B, D)
    z_a = neg_proj.reshape(B, -1, NUM_ANCHORS, PROJ_DIM).mean(axis=1)          # (B, A, D)

    # --- pipeline 1: AdaptiveAvgPool commutes with the pointwise stand-in, so
    # pool the crop to (B, 3); the head itself is fused into the loss kernel. ---
    pooled3 = jnp.mean(x_i, axis=(2, 3))                          # (B, 3)

    loss = pallas_ntxent_loss(pooled3, res_w1f, res_b1f.reshape(1, -1),
                              res_w2, params['p1_b2'].reshape(1, -1),
                              z_j, z_a, TEMPERATURE)
    return {'loss': loss}


if __name__ == "__main__":
    key = jax.random.PRNGKey(0)
    kp, ki, kj, ks = jax.random.split(key, 4)
    params = init_params(kp)
    batch = {
        'image_crop': jax.random.normal(ki, (2, 3, 64, 64), jnp.float32),
        'image_original': jax.random.normal(kj, (2, 3, 64, 64), jnp.float32),
        # crop_coords rows are (y, x, h, w) in image pixels
        'crop_coords': jnp.array([[10., 20., 24., 16.],
                                  [5.,  8., 30., 40.]], jnp.float32),
    }
    fwd = jax.jit(unsupervised_detector_forward)
    out = fwd(params, batch, ks)
    loss = jax.block_until_ready(out['loss'])
    assert bool(jnp.isfinite(loss))
    print("KERNEL_OK")
</pallas_src>

<mosaic_0001>
module attributes {stable_mosaic.version = 11 : i64} {
  func.func @mlp2_kernel(%arg0: i32, %arg1: memref<44x3xf32, #tpu.memory_space<vmem>>, %arg2: memref<3x512xf32, #tpu.memory_space<vmem>>, %arg3: memref<1x512xf32, #tpu.memory_space<vmem>>, %arg4: memref<512x128xbf16, #tpu.memory_space<vmem>>, %arg5: memref<1x128xf32, #tpu.memory_space<vmem>>, %arg6: memref<44x128xf32, #tpu.memory_space<vmem>>) attributes {dimension_semantics = [#tpu.dimension_semantics<parallel>], iteration_bounds = array<i64: 1>, scalar_prefetch = 0 : i64, scratch_operands = 0 : i64, tpu.core_type = #tpu.core_type<tc>, window_params = [{transform_indices = @transform_0, window_bounds = array<i64: 44, 3>}, {pipeline_mode = #tpu.pipeline_mode<synchronous>, transform_indices = @transform_1, window_bounds = array<i64: 3, 512>}, {pipeline_mode = #tpu.pipeline_mode<synchronous>, transform_indices = @transform_2, window_bounds = array<i64: 1, 512>}, {pipeline_mode = #tpu.pipeline_mode<synchronous>, transform_indices = @transform_3, window_bounds = array<i64: 512, 128>}, {pipeline_mode = #tpu.pipeline_mode<synchronous>, transform_indices = @transform_4, window_bounds = array<i64: 1, 128>}, {transform_indices = @transform_5, window_bounds = array<i64: 44, 128>}]} {
    %c0 = arith.constant 0 : index
    %c0_0 = arith.constant 0 : index
    %0 = vector.load %arg1[%c0, %c0_0] : memref<44x3xf32, #tpu.memory_space<vmem>>, vector<44x3xf32>
    %c0_1 = arith.constant 0 : index
    %c0_2 = arith.constant 0 : index
    %1 = vector.load %arg2[%c0_1, %c0_2] : memref<3x512xf32, #tpu.memory_space<vmem>>, vector<3x512xf32>
    %c0_3 = arith.constant 0 : index
    %c0_4 = arith.constant 0 : index
    %2 = vector.load %arg3[%c0_3, %c0_4] : memref<1x512xf32, #tpu.memory_space<vmem>>, vector<1x512xf32>
    %3 = vector.extract_strided_slice %0 {offsets = [0, 0], sizes = [44, 1], strides = [1, 1]} : vector<44x3xf32> to vector<44x1xf32>
    %4 = vector.extract_strided_slice %1 {offsets = [0, 0], sizes = [1, 512], strides = [1, 1]} : vector<3x512xf32> to vector<1x512xf32>
    %5 = vector.broadcast %3 : vector<44x1xf32> to vector<44x512xf32>
    %6 = vector.broadcast %4 : vector<1x512xf32> to vector<44x512xf32>
    %7 = arith.mulf %5, %6 : vector<44x512xf32>
    %8 = vector.broadcast %2 : vector<1x512xf32> to vector<44x512xf32>
    %9 = arith.addf %8, %7 : vector<44x512xf32>
    %10 = vector.extract_strided_slice %0 {offsets = [0, 1], sizes = [44, 1], strides = [1, 1]} : vector<44x3xf32> to vector<44x1xf32>
    %11 = vector.extract_strided_slice %1 {offsets = [1, 0], sizes = [1, 512], strides = [1, 1]} : vector<3x512xf32> to vector<1x512xf32>
    %12 = vector.broadcast %10 : vector<44x1xf32> to vector<44x512xf32>
    %13 = vector.broadcast %11 : vector<1x512xf32> to vector<44x512xf32>
    %14 = arith.mulf %12, %13 : vector<44x512xf32>
    %15 = arith.addf %9, %14 : vector<44x512xf32>
    %16 = vector.extract_strided_slice %0 {offsets = [0, 2], sizes = [44, 1], strides = [1, 1]} : vector<44x3xf32> to vector<44x1xf32>
    %17 = vector.extract_strided_slice %1 {offsets = [2, 0], sizes = [1, 512], strides = [1, 1]} : vector<3x512xf32> to vector<1x512xf32>
    %18 = vector.broadcast %16 : vector<44x1xf32> to vector<44x512xf32>
    %19 = vector.broadcast %17 : vector<1x512xf32> to vector<44x512xf32>
    %20 = arith.mulf %18, %19 : vector<44x512xf32>
    %21 = arith.addf %15, %20 : vector<44x512xf32>
    %cst = arith.constant 0.000000e+00 : f32
    %22 = vector.broadcast %cst : f32 to vector<44x512xf32>
    %23 = arith.maximumf %21, %22 : vector<44x512xf32>
    %24 = arith.truncf %23 : vector<44x512xf32> to vector<44x512xbf16>
    %c0_5 = arith.constant 0 : index
    %c0_6 = arith.constant 0 : index
    %25 = vector.load %arg4[%c0_5, %c0_6] : memref<512x128xbf16, #tpu.memory_space<vmem>>, vector<512x128xbf16>
    %cst_7 = arith.constant dense<0.000000e+00> : vector<44x128xf32>
    %26 = tpu.matmul %24, %25, %cst_7 {dimension_numbers = #tpu.dot_dimension_numbers<[1], [0], [0], [1], [0, 0, 1, 1], [], []>} : vector<44x512xbf16>, vector<512x128xbf16>, vector<44x128xf32> -> vector<44x128xf32>
    %c0_8 = arith.constant 0 : index
    %c0_9 = arith.constant 0 : index
    %27 = vector.load %arg5[%c0_8, %c0_9] : memref<1x128xf32, #tpu.memory_space<vmem>>, vector<1x128xf32>
    %28 = vector.broadcast %27 : vector<1x128xf32> to vector<44x128xf32>
    %29 = arith.addf %26, %28 : vector<44x128xf32>
    %c0_10 = arith.constant 0 : index
    %c0_11 = arith.constant 0 : index
    %30 = vector.load %arg6[%c0_10, %c0_11] : memref<44x128xf32, #tpu.memory_space<vmem>>, vector<44x128xf32>
    tpu.vector_store %arg6[%c0_10, %c0_11], %29 {strides = array<i32>} : memref<44x128xf32, #tpu.memory_space<vmem>>, vector<44x128xf32>,
    return
  }
  func.func @transform_0(%arg0: i32) -> (i32, i32) {
    %c0_i32 = arith.constant 0 : i32
    %c0_i32_0 = arith.constant 0 : i32
    return %arg0, %c0_i32 : i32, i32
  }
  func.func @transform_1(%arg0: i32) -> (i32, i32) {
    %c0_i32 = arith.constant 0 : i32
    %c0_i32_0 = arith.constant 0 : i32
    %c0_i32_1 = arith.constant 0 : i32
    return %c0_i32, %c0_i32_0 : i32, i32
  }
  func.func @transform_2(%arg0: i32) -> (i32, i32) {
    %c0_i32 = arith.constant 0 : i32
    %c0_i32_0 = arith.constant 0 : i32
    %c0_i32_1 = arith.constant 0 : i32
    return %c0_i32, %c0_i32_0 : i32, i32
  }
  func.func @transform_3(%arg0: i32) -> (i32, i32) {
    %c0_i32 = arith.constant 0 : i32
    %c0_i32_0 = arith.constant 0 : i32
    %c0_i32_1 = arith.constant 0 : i32
    return %c0_i32, %c0_i32_0 : i32, i32
  }
  func.func @transform_4(%arg0: i32) -> (i32, i32) {
    %c0_i32 = arith.constant 0 : i32
    %c0_i32_0 = arith.constant 0 : i32
    %c0_i32_1 = arith.constant 0 : i32
    return %c0_i32, %c0_i32_0 : i32, i32
  }
  func.func @transform_5(%arg0: i32) -> (i32, i32) {
    %c0_i32 = arith.constant 0 : i32
    %c0_i32_0 = arith.constant 0 : i32
    return %arg0, %c0_i32 : i32, i32
  }
}

module attributes {stable_mosaic.version = 11 : i64} {
  func.func @ntxent_res_kernel(%arg0: memref<2x3xf32, #tpu.memory_space<vmem>>, %arg1: memref<3x512xf32, #tpu.memory_space<vmem>>, %arg2: memref<1x512xf32, #tpu.memory_space<vmem>>, %arg3: memref<512x128xbf16, #tpu.memory_space<vmem>>, %arg4: memref<1x128xf32, #tpu.memory_space<vmem>>, %arg5: memref<2x128xf32, #tpu.memory_space<vmem>>, %arg6: memref<2x10x128xf32, #tpu.memory_space<vmem>>, %arg7: memref<1x1xf32, #tpu.memory_space<smem>>) attributes {dimension_semantics = [], scalar_prefetch = 0 : i64, scratch_operands = 0 : i64, tpu.core_type = #tpu.core_type<tc>} {
    %c0 = arith.constant 0 : index
    %c0_0 = arith.constant 0 : index
    %0 = vector.load %arg0[%c0, %c0_0] : memref<2x3xf32, #tpu.memory_space<vmem>>, vector<2x3xf32>
    %c0_1 = arith.constant 0 : index
    %c0_2 = arith.constant 0 : index
    %1 = vector.load %arg1[%c0_1, %c0_2] : memref<3x512xf32, #tpu.memory_space<vmem>>, vector<3x512xf32>
    %c0_3 = arith.constant 0 : index
    %c0_4 = arith.constant 0 : index
    %2 = vector.load %arg2[%c0_3, %c0_4] : memref<1x512xf32, #tpu.memory_space<vmem>>, vector<1x512xf32>
    %3 = vector.extract_strided_slice %0 {offsets = [0, 0], sizes = [2, 1], strides = [1, 1]} : vector<2x3xf32> to vector<2x1xf32>
    %4 = vector.extract_strided_slice %1 {offsets = [0, 0], sizes = [1, 512], strides = [1, 1]} : vector<3x512xf32> to vector<1x512xf32>
    %5 = vector.broadcast %3 : vector<2x1xf32> to vector<2x512xf32>
    %6 = vector.broadcast %4 : vector<1x512xf32> to vector<2x512xf32>
    %7 = arith.mulf %5, %6 : vector<2x512xf32>
    %8 = vector.broadcast %2 : vector<1x512xf32> to vector<2x512xf32>
    %9 = arith.addf %8, %7 : vector<2x512xf32>
    %10 = vector.extract_strided_slice %0 {offsets = [0, 1], sizes = [2, 1], strides = [1, 1]} : vector<2x3xf32> to vector<2x1xf32>
    %11 = vector.extract_strided_slice %1 {offsets = [1, 0], sizes = [1, 512], strides = [1, 1]} : vector<3x512xf32> to vector<1x512xf32>
    %12 = vector.broadcast %10 : vector<2x1xf32> to vector<2x512xf32>
    %13 = vector.broadcast %11 : vector<1x512xf32> to vector<2x512xf32>
    %14 = arith.mulf %12, %13 : vector<2x512xf32>
    %15 = arith.addf %9, %14 : vector<2x512xf32>
    %16 = vector.extract_strided_slice %0 {offsets = [0, 2], sizes = [2, 1], strides = [1, 1]} : vector<2x3xf32> to vector<2x1xf32>
    %17 = vector.extract_strided_slice %1 {offsets = [2, 0], sizes = [1, 512], strides = [1, 1]} : vector<3x512xf32> to vector<1x512xf32>
    %18 = vector.broadcast %16 : vector<2x1xf32> to vector<2x512xf32>
    %19 = vector.broadcast %17 : vector<1x512xf32> to vector<2x512xf32>
    %20 = arith.mulf %18, %19 : vector<2x512xf32>
    %21 = arith.addf %15, %20 : vector<2x512xf32>
    %cst = arith.constant 0.000000e+00 : f32
    %22 = vector.broadcast %cst : f32 to vector<2x512xf32>
    %23 = arith.maximumf %21, %22 : vector<2x512xf32>
    %24 = arith.truncf %23 : vector<2x512xf32> to vector<2x512xbf16>
    %c0_5 = arith.constant 0 : index
    %c0_6 = arith.constant 0 : index
    %25 = vector.load %arg3[%c0_5, %c0_6] : memref<512x128xbf16, #tpu.memory_space<vmem>>, vector<512x128xbf16>
    %cst_7 = arith.constant dense<0.000000e+00> : vector<2x128xf32>
    %26 = tpu.matmul %24, %25, %cst_7 {dimension_numbers = #tpu.dot_dimension_numbers<[1], [0], [0], [1], [0, 0, 1, 1], [], []>} : vector<2x512xbf16>, vector<512x128xbf16>, vector<2x128xf32> -> vector<2x128xf32>
    %c0_8 = arith.constant 0 : index
    %c0_9 = arith.constant 0 : index
    %27 = vector.load %arg4[%c0_8, %c0_9] : memref<1x128xf32, #tpu.memory_space<vmem>>, vector<1x128xf32>
    %28 = vector.broadcast %27 : vector<1x128xf32> to vector<2x128xf32>
    %29 = arith.addf %26, %28 : vector<2x128xf32>
    %c0_10 = arith.constant 0 : index
    %c0_11 = arith.constant 0 : index
    %30 = vector.load %arg5[%c0_10, %c0_11] : memref<2x128xf32, #tpu.memory_space<vmem>>, vector<2x128xf32>
    %c0_12 = arith.constant 0 : index
    %c0_13 = arith.constant 0 : index
    %c0_14 = arith.constant 0 : index
    %31 = vector.load %arg6[%c0_12, %c0_13, %c0_14] : memref<2x10x128xf32, #tpu.memory_space<vmem>>, vector<2x10x128xf32>
    %32 = arith.mulf %29, %29 : vector<2x128xf32>
    %cst_15 = arith.constant dense<0.000000e+00> : vector<2xf32>
    %33 = vector.multi_reduction <add>, %32, %cst_15 [1] : vector<2x128xf32> to vector<2xf32>
    %34 = vector.shape_cast %33 : vector<2xf32> to vector<2x1xf32>
    %cst_16 = arith.constant 1.000000e-24 : f32
    %35 = vector.broadcast %cst_16 : f32 to vector<2x1xf32>
    %36 = arith.maximumf %34, %35 : vector<2x1xf32>
    %37 = math.rsqrt %36 : vector<2x1xf32>
    %38 = vector.broadcast %37 : vector<2x1xf32> to vector<2x128xf32>
    %39 = arith.mulf %29, %38 : vector<2x128xf32>
    %40 = arith.mulf %30, %30 : vector<2x128xf32>
    %cst_17 = arith.constant dense<0.000000e+00> : vector<2xf32>
    %41 = vector.multi_reduction <add>, %40, %cst_17 [1] : vector<2x128xf32> to vector<2xf32>
    %42 = vector.shape_cast %41 : vector<2xf32> to vector<2x1xf32>
    %cst_18 = arith.constant 1.000000e-24 : f32
    %43 = vector.broadcast %cst_18 : f32 to vector<2x1xf32>
    %44 = arith.maximumf %42, %43 : vector<2x1xf32>
    %45 = math.rsqrt %44 : vector<2x1xf32>
    %46 = vector.broadcast %45 : vector<2x1xf32> to vector<2x128xf32>
    %47 = arith.mulf %30, %46 : vector<2x128xf32>
    %48 = arith.mulf %31, %31 : vector<2x10x128xf32>
    %cst_19 = arith.constant dense<0.000000e+00> : vector<2x10xf32>
    %49 = vector.multi_reduction <add>, %48, %cst_19 [2] : vector<2x10x128xf32> to vector<2x10xf32>
    %50 = vector.shape_cast %49 : vector<2x10xf32> to vector<2x10x1xf32>
    %cst_20 = arith.constant 1.000000e-24 : f32
    %51 = vector.broadcast %cst_20 : f32 to vector<2x10x1xf32>
    %52 = arith.maximumf %50, %51 : vector<2x10x1xf32>
    %53 = math.rsqrt %52 : vector<2x10x1xf32>
    %54 = vector.broadcast %53 : vector<2x10x1xf32> to vector<2x10x128xf32>
    %55 = arith.mulf %31, %54 : vector<2x10x128xf32>
    %56 = arith.mulf %39, %47 : vector<2x128xf32>
    %cst_21 = arith.constant dense<0.000000e+00> : vector<2xf32>
    %57 = vector.multi_reduction <add>, %56, %cst_21 [1] : vector<2x128xf32> to vector<2xf32>
    %58 = vector.shape_cast %57 : vector<2xf32> to vector<2x1xf32>
    %cst_22 = arith.constant 1.000000e+01 : f32
    %59 = vector.broadcast %cst_22 : f32 to vector<2x1xf32>
    %60 = arith.mulf %58, %59 : vector<2x1xf32>
    %61 = tpu.transpose %47, [1, 0] : vector<2x128xf32> -> vector<128x2xf32>
    %cst_23 = arith.constant dense<0.000000e+00> : vector<2x2xf32>
    %62 = tpu.matmul %39, %61, %cst_23 {dimension_numbers = #tpu.dot_dimension_numbers<[1], [0], [0], [1], [0, 0, 1, 1], [], []>} : vector<2x128xf32>, vector<128x2xf32>, vector<2x2xf32> -> vector<2x2xf32>
    %cst_24 = arith.constant 1.000000e+01 : f32
    %63 = vector.broadcast %cst_24 : f32 to vector<2x2xf32>
    %64 = arith.mulf %62, %63 : vector<2x2xf32>
    %65 = vector.shape_cast %39 : vector<2x128xf32> to vector<2x1x128xf32>
    %66 = vector.broadcast %65 : vector<2x1x128xf32> to vector<2x10x128xf32>
    %67 = arith.mulf %66, %55 : vector<2x10x128xf32>
    %cst_25 = arith.constant dense<0.000000e+00> : vector<2x10xf32>
    %68 = vector.multi_reduction <add>, %67, %cst_25 [2] : vector<2x10x128xf32> to vector<2x10xf32>
    %cst_26 = arith.constant 1.000000e+01 : f32
    %69 = vector.broadcast %cst_26 : f32 to vector<2x10xf32>
    %70 = arith.mulf %68, %69 : vector<2x10xf32>
    %71 = tpu.iota {dimensions = array<i32: 0>} : vector<2x2xi32>
    %72 = tpu.iota {dimensions = array<i32: 1>} : vector<2x2xi32>
    %73 = arith.cmpi eq, %71, %72 : vector<2x2xi32>
    %cst_27 = arith.constant -1.000000e+30 : f32
    %74 = vector.broadcast %cst_27 : f32 to vector<2x2xf32>
    %75 = arith.select %73, %74, %64 : vector<2x2xi1>, vector<2x2xf32>
    %cst_28 = arith.constant dense<0xFF800000> : vector<2xf32>
    %76 = vector.multi_reduction <maximumf>, %75, %cst_28 [1] : vector<2x2xf32> to vector<2xf32>
    %77 = vector.shape_cast %76 : vector<2xf32> to vector<2x1xf32>
    %78 = arith.maximumf %60, %77 : vector<2x1xf32>
    %cst_29 = arith.constant dense<0xFF800000> : vector<2xf32>
    %79 = vector.multi_reduction <maximumf>, %70, %cst_29 [1] : vector<2x10xf32> to vector<2xf32>
    %80 = vector.shape_cast %79 : vector<2xf32> to vector<2x1xf32>
    %81 = arith.maximumf %78, %80 : vector<2x1xf32>
    %82 = arith.subf %60, %81 : vector<2x1xf32>
    %83 = math.exp %82 : vector<2x1xf32>
    %84 = vector.broadcast %81 : vector<2x1xf32> to vector<2x2xf32>
    %85 = arith.subf %75, %84 : vector<2x2xf32>
    %86 = math.exp %85 : vector<2x2xf32>
    %cst_30 = arith.constant dense<0.000000e+00> : vector<2xf32>
    %87 = vector.multi_reduction <add>, %86, %cst_30 [1] : vector<2x2xf32> to vector<2xf32>
    %88 = vector.shape_cast %87 : vector<2xf32> to vector<2x1xf32>
    %89 = arith.addf %83, %88 : vector<2x1xf32>
    %90 = vector.broadcast %81 : vector<2x1xf32> to vector<2x10xf32>
    %91 = arith.subf %70, %90 : vector<2x10xf32>
    %92 = math.exp %91 : vector<2x10xf32>
    %cst_31 = arith.constant dense<0.000000e+00> : vector<2xf32>
    %93 = vector.multi_reduction <add>, %92, %cst_31 [1] : vector<2x10xf32> to vector<2xf32>
    %94 = vector.shape_cast %93 : vector<2xf32> to vector<2x1xf32>
    %95 = arith.addf %89, %94 : vector<2x1xf32>
    %96 = math.log %95 : vector<2x1xf32>
    %97 = arith.addf %96, %81 : vector<2x1xf32>
    %98 = arith.subf %97, %60 : vector<2x1xf32>
    %99 = vector.shape_cast %98 : vector<2x1xf32> to vector<1x2x1xf32>
    %cst_32 = arith.constant dense<0.000000e+00> : vector<1xf32>
    %100 = vector.multi_reduction <add>, %99, %cst_32 [1, 2] : vector<1x2x1xf32> to vector<1xf32>
    %101 = vector.shape_cast %100 : vector<1xf32> to vector<1x1x1xf32>
    %102 = vector.extract %101[0, 0, 0] : f32 from vector<1x1x1xf32>
    %cst_33 = arith.constant 2.000000e+00 : f32
    %103 = arith.divf %102, %cst_33 : f32
    %c0_34 = arith.constant 0 : index
    %c0_35 = arith.constant 0 : index
    %104 = memref.load %arg7[%c0_34, %c0_35] : memref<1x1xf32, #tpu.memory_space<smem>>
    memref.store %103, %arg7[%c0_34, %c0_35] : memref<1x1xf32, #tpu.memory_space<smem>>
    return
  }
}

</mosaic_0001>

<llo_original>
// kernel: unsupervised_detector_forward.2
$region0: #{unsupervised_detector_forward.2}
  #allocation0 [shape = 'u32[]', space=smem, size = 0x4, offset = 0x4, fixed_abs, tag = 'smem constant byte address 0x4 - core index']
  #allocation1 [shape = 'u32[72,128]{1,0:T(1,128)}', space=vmem, size = 0x9000, scoped, tag = 'internal scratch']
  %s0 = inlined_call_operand.vmem [shape: f32[44,3], index: 0, kind: input, shape index: {}]
  %s1 = inlined_call_operand.vmem [shape: f32[3,512], index: 1, kind: input, shape index: {}]
  %s2 = inlined_call_operand.vmem [shape: f32[1,512], index: 2, kind: input, shape index: {}]
  %s3 = inlined_call_operand.vmem [shape: bf16[512,128], index: 3, kind: input, shape index: {}]
  %s4 = inlined_call_operand.vmem [shape: f32[1,128], index: 4, kind: input, shape index: {}]
  %s5 = inlined_call_operand.vmem [shape: f32[44,128], index: 5, kind: output, shape index: {}]
  %s6 = sld [smem:[#allocation0]]
  $region30: #{unsupervised_detector_forward.2} parent=0
    _
  %s8 = ssub.s32 1, %s6
  %s9 = scalar_select 0, %s8, %s6
  // Predicated region
  $region2: #{unsupervised_detector_forward.2} parent=0 // pred_check
    _
  $region3: #{unsupervised_detector_forward.2} parent=0 // pred_check_branch
    %11 = sbr.rel (0) target = $region5
  $region4: #{unsupervised_detector_forward.2} parent=0 // pred_region
    _
  $region5: #{unsupervised_detector_forward.2} parent=0 // pred_fallthru
    _
  // Predicated region
  $region6: #{unsupervised_detector_forward.2} parent=0 // pred_check
    _
  $region7: #{unsupervised_detector_forward.2} parent=0 // pred_check_branch
    %13 = sbr.rel (0) target = $region9
  $region8: #{unsupervised_detector_forward.2} parent=0 // pred_region
    _
  $region9: #{unsupervised_detector_forward.2} parent=0 // pred_fallthru
    _
  // Predicated region
  $region10: #{unsupervised_detector_forward.2} parent=0 // pred_check
    _
  $region11: #{unsupervised_detector_forward.2} parent=0 // pred_check_branch
    %15 = sbr.rel (0) target = $region13
  $region12: #{unsupervised_detector_forward.2} parent=0 // pred_region
    _
  $region13: #{unsupervised_detector_forward.2} parent=0 // pred_fallthru
    _
  // Predicated region
  $region14: #{unsupervised_detector_forward.2} parent=0 // pred_check
    _
  $region15: #{unsupervised_detector_forward.2} parent=0 // pred_check_branch
    %17 = sbr.rel (0) target = $region17
  $region16: #{unsupervised_detector_forward.2} parent=0 // pred_region
    _
  $region17: #{unsupervised_detector_forward.2} parent=0 // pred_fallthru
    _
  // Predicated region
  $region18: #{unsupervised_detector_forward.2} parent=0 // pred_check
    _
  $region19: #{unsupervised_detector_forward.2} parent=0 // pred_check_branch
    %19 = sbr.rel (0) target = $region21
  $region20: #{unsupervised_detector_forward.2} parent=0 // pred_region
    _
  $region21: #{unsupervised_detector_forward.2} parent=0 // pred_fallthru
    _
  %v20 = vld [vmem:[%s0] sm:$0xff]
  %v21 = vld [vmem:[%s0 + $0x8] sm:$0xff]
  %v22 = vld [vmem:[%s0 + $0x10] sm:$0xff]
  %v23 = vld [vmem:[%s0 + $0x18] sm:$0xff]
  %v24 = vld [vmem:[%s0 + $0x20] sm:$0xff]
  %v25 = vld [vmem:[%s0 + $0x28] sm:$0xf]
  %v26 = vld [vmem:[%s1] sm:$0x77]
  %v27 = vld [vmem:[%s1 + $0x8] sm:$0x77]
  %v28 = vld [vmem:[%s2] sm:$0xf]
  %30 = vset.pattern.permute.xlu0 0
  %31 = vperm.xlu0 %30, %v20
  %v32 = vpop.permute.xlu0 %31
  %35 = vset.pattern.permute.xlu0 0
  %36 = vperm.xlu0 %35, %v21
  %v37 = vpop.permute.xlu0 %36
  %40 = vset.pattern.permute.xlu0 0
  %41 = vperm.xlu0 %40, %v22
  %v42 = vpop.permute.xlu0 %41
  %45 = vset.pattern.permute.xlu0 0
  %46 = vperm.xlu0 %45, %v23
  %v47 = vpop.permute.xlu0 %46
  %50 = vset.pattern.permute.xlu0 0
  %51 = vperm.xlu0 %50, %v24
  %v52 = vpop.permute.xlu0 %51
  %55 = vset.pattern.permute.xlu0 0
  %56 = vperm.xlu0 %55, %v25
  %v57 = vpop.permute.xlu0 %56
  %v61 = vperm.slane %v26, 0
  %v62 = vperm.slane %v26, 4
  %v63 = vperm.slane %v27, 0
  %v64 = vperm.slane %v27, 4
  %v69 = vperm.slane %v61, 0
  %v70 = vperm.slane %v62, 0
  %v71 = vperm.slane %v63, 0
  %v72 = vperm.slane %v64, 0
  %v73 = vmul.f32 %v32, %v69
  %v74 = vmul.f32 %v32, %v70
  %v75 = vmul.f32 %v32, %v71
  %v76 = vmul.f32 %v32, %v72
  %v77 = vmul.f32 %v37, %v69
  %v78 = vmul.f32 %v37, %v70
  %v79 = vmul.f32 %v37, %v71
  %v80 = vmul.f32 %v37, %v72
  %v81 = vmul.f32 %v42, %v69
  %v82 = vmul.f32 %v42, %v70
  %v83 = vmul.f32 %v42, %v71
  %v84 = vmul.f32 %v42, %v72
  %v85 = vmul.f32 %v47, %v69
  %v86 = vmul.f32 %v47, %v70
  %v87 = vmul.f32 %v47, %v71
  %v88 = vmul.f32 %v47, %v72
  %v89 = vmul.f32 %v52, %v69
  %v90 = vmul.f32 %v52, %v70
  %v91 = vmul.f32 %v52, %v71
  %v92 = vmul.f32 %v52, %v72
  %v93 = vmul.f32 %v57, %v69
  %v94 = vmul.f32 %v57, %v70
  %v95 = vmul.f32 %v57, %v71
  %v96 = vmul.f32 %v57, %v72
  %v98 = vperm.slane %v28, 0
  %v99 = vperm.slane %v28, 1
  %v100 = vperm.slane %v28, 2
  %v101 = vperm.slane %v28, 3
  %v106 = vadd.f32 %v98, %v73
  %v107 = vadd.f32 %v99, %v74
  %v108 = vadd.f32 %v100, %v75
  %v109 = vadd.f32 %v101, %v76
  %v110 = vadd.f32 %v98, %v77
  %v111 = vadd.f32 %v99, %v78
  %v112 = vadd.f32 %v100, %v79
  %v113 = vadd.f32 %v101, %v80
  %v114 = vadd.f32 %v98, %v81
  %v115 = vadd.f32 %v99, %v82
  %v116 = vadd.f32 %v100, %v83
  %v117 = vadd.f32 %v101, %v84
  %v118 = vadd.f32 %v98, %v85
  %v119 = vadd.f32 %v99, %v86
  %v120 = vadd.f32 %v100, %v87
  %v121 = vadd.f32 %v101, %v88
  %v122 = vadd.f32 %v98, %v89
  %v123 = vadd.f32 %v99, %v90
  %v124 = vadd.f32 %v100, %v91
  %v125 = vadd.f32 %v101, %v92
  %v126 = vadd.f32 %v98, %v93
  %v127 = vadd.f32 %v99, %v94
  %v128 = vadd.f32 %v100, %v95
  %v129 = vadd.f32 %v101, %v96
  %130 = vset.pattern.permute.xlu0 1
  %131 = vperm.xlu0 %130, %v20
  %v132 = vpop.permute.xlu0 %131
  %134 = vset.pattern.permute.xlu0 1
  %135 = vperm.xlu0 %134, %v21
  %v136 = vpop.permute.xlu0 %135
  %138 = vset.pattern.permute.xlu0 1
  %139 = vperm.xlu0 %138, %v22
  %v140 = vpop.permute.xlu0 %139
  %142 = vset.pattern.permute.xlu0 1
  %143 = vperm.xlu0 %142, %v23
  %v144 = vpop.permute.xlu0 %143
  %146 = vset.pattern.permute.xlu0 1
  %147 = vperm.xlu0 %146, %v24
  %v148 = vpop.permute.xlu0 %147
  %150 = vset.pattern.permute.xlu0 1
  %151 = vperm.xlu0 %150, %v25
  %v152 = vpop.permute.xlu0 %151
  %v154 = vperm.slane %v26, 1
  %v155 = vperm.slane %v26, 5
  %v156 = vperm.slane %v27, 1
  %v157 = vperm.slane %v27, 5
  %v162 = vperm.slane %v154, 1
  %v163 = vperm.slane %v155, 1
  %v164 = vperm.slane %v156, 1
  %v165 = vperm.slane %v157, 1
  %v166 = vmul.f32 %v132, %v162
  %v167 = vmul.f32 %v132, %v163
  %v168 = vmul.f32 %v132, %v164
  %v169 = vmul.f32 %v132, %v165
  %v170 = vmul.f32 %v136, %v162
  %v171 = vmul.f32 %v136, %v163
  %v172 = vmul.f32 %v136, %v164
  %v173 = vmul.f32 %v136, %v165
  %v174 = vmul.f32 %v140, %v162
  %v175 = vmul.f32 %v140, %v163
  %v176 = vmul.f32 %v140, %v164
  %v177 = vmul.f32 %v140, %v165
  %v178 = vmul.f32 %v144, %v162
  %v179 = vmul.f32 %v144, %v163
  %v180 = vmul.f32 %v144, %v164
  %v181 = vmul.f32 %v144, %v165
  %v182 = vmul.f32 %v148, %v162
  %v183 = vmul.f32 %v148, %v163
  %v184 = vmul.f32 %v148, %v164
  %v185 = vmul.f32 %v148, %v165
  %v186 = vmul.f32 %v152, %v162
  %v187 = vmul.f32 %v152, %v163
  %v188 = vmul.f32 %v152, %v164
  %v189 = vmul.f32 %v152, %v165
  %v190 = vadd.f32 %v106, %v166
  %v191 = vadd.f32 %v107, %v167
  %v192 = vadd.f32 %v108, %v168
  %v193 = vadd.f32 %v109, %v169
  %v194 = vadd.f32 %v110, %v170
  %v195 = vadd.f32 %v111, %v171
  %v196 = vadd.f32 %v112, %v172
  %v197 = vadd.f32 %v113, %v173
  %v198 = vadd.f32 %v114, %v174
  %v199 = vadd.f32 %v115, %v175
  %v200 = vadd.f32 %v116, %v176
  %v201 = vadd.f32 %v117, %v177
  %v202 = vadd.f32 %v118, %v178
  %v203 = vadd.f32 %v119, %v179
  %v204 = vadd.f32 %v120, %v180
  %v205 = vadd.f32 %v121, %v181
  %v206 = vadd.f32 %v122, %v182
  %v207 = vadd.f32 %v123, %v183
  %v208 = vadd.f32 %v124, %v184
  %v209 = vadd.f32 %v125, %v185
  %v210 = vadd.f32 %v126, %v186
  %v211 = vadd.f32 %v127, %v187
  %v212 = vadd.f32 %v128, %v188
  %v213 = vadd.f32 %v129, %v189
  %214 = vset.pattern.permute.xlu0 2
  %215 = vperm.xlu0 %214, %v20
  %v216 = vpop.permute.xlu0 %215
  %218 = vset.pattern.permute.xlu0 2
  %219 = vperm.xlu0 %218, %v21
  %v220 = vpop.permute.xlu0 %219
  %222 = vset.pattern.permute.xlu0 2
  %223 = vperm.xlu0 %222, %v22
  %v224 = vpop.permute.xlu0 %223
  %226 = vset.pattern.permute.xlu0 2
  %227 = vperm.xlu0 %226, %v23
  %v228 = vpop.permute.xlu0 %227
  %230 = vset.pattern.permute.xlu0 2
  %231 = vperm.xlu0 %230, %v24
  %v232 = vpop.permute.xlu0 %231
  %234 = vset.pattern.permute.xlu0 2
  %235 = vperm.xlu0 %234, %v25
  %v236 = vpop.permute.xlu0 %235
  %v238 = vperm.slane %v26, 2
  %v239 = vperm.slane %v26, 6
  %v240 = vperm.slane %v27, 2
  %v241 = vperm.slane %v27, 6
  %v246 = vperm.slane %v238, 2
  %v247 = vperm.slane %v239, 2
  %v248 = vperm.slane %v240, 2
  %v249 = vperm.slane %v241, 2
  %v250 = vmul.f32 %v216, %v246
  %v251 = vmul.f32 %v216, %v247
  %v252 = vmul.f32 %v216, %v248
  %v253 = vmul.f32 %v216, %v249
  %v254 = vmul.f32 %v220, %v246
  %v255 = vmul.f32 %v220, %v247
  %v256 = vmul.f32 %v220, %v248
  %v257 = vmul.f32 %v220, %v249
  %v258 = vmul.f32 %v224, %v246
  %v259 = vmul.f32 %v224, %v247
  %v260 = vmul.f32 %v224, %v248
  %v261 = vmul.f32 %v224, %v249
  %v262 = vmul.f32 %v228, %v246
  %v263 = vmul.f32 %v228, %v247
  %v264 = vmul.f32 %v228, %v248
  %v265 = vmul.f32 %v228, %v249
  %v266 = vmul.f32 %v232, %v246
  %v267 = vmul.f32 %v232, %v247
  %v268 = vmul.f32 %v232, %v248
  %v269 = vmul.f32 %v232, %v249
  %v270 = vmul.f32 %v236, %v246
  %v271 = vmul.f32 %v236, %v247
  %v272 = vmul.f32 %v236, %v248
  %v273 = vmul.f32 %v236, %v249
  %v274 = vadd.f32 %v190, %v250
  %v275 = vadd.f32 %v191, %v251
  %v276 = vadd.f32 %v192, %v252
  %v277 = vadd.f32 %v193, %v253
  %v278 = vadd.f32 %v194, %v254
  %v279 = vadd.f32 %v195, %v255
  %v280 = vadd.f32 %v196, %v256
  %v281 = vadd.f32 %v197, %v257
  %v282 = vadd.f32 %v198, %v258
  %v283 = vadd.f32 %v199, %v259
  %v284 = vadd.f32 %v200, %v260
  %v285 = vadd.f32 %v201, %v261
  %v286 = vadd.f32 %v202, %v262
  %v287 = vadd.f32 %v203, %v263
  %v288 = vadd.f32 %v204, %v264
  %v289 = vadd.f32 %v205, %v265
  %v290 = vadd.f32 %v206, %v266
  %v291 = vadd.f32 %v207, %v267
  %v292 = vadd.f32 %v208, %v268
  %v293 = vadd.f32 %v209, %v269
  %v294 = vadd.f32 %v210, %v270
  %v295 = vadd.f32 %v211, %v271
  %v296 = vadd.f32 %v212, %v272
  %v297 = vadd.f32 %v213, %v273
  %v298 = vmax.f32 %v274, 0.0
  %v299 = vmax.f32 %v275, 0.0
  %v300 = vmax.f32 %v276, 0.0
  %v301 = vmax.f32 %v277, 0.0
  %v302 = vmax.f32 %v278, 0.0
  %v303 = vmax.f32 %v279, 0.0
  %v304 = vmax.f32 %v280, 0.0
  %v305 = vmax.f32 %v281, 0.0
  %v306 = vmax.f32 %v282, 0.0
  %v307 = vmax.f32 %v283, 0.0
  %v308 = vmax.f32 %v284, 0.0
  %v309 = vmax.f32 %v285, 0.0
  %v310 = vmax.f32 %v286, 0.0
  %v311 = vmax.f32 %v287, 0.0
  %v312 = vmax.f32 %v288, 0.0
  %v313 = vmax.f32 %v289, 0.0
  %v314 = vmax.f32 %v290, 0.0
  %v315 = vmax.f32 %v291, 0.0
  %v316 = vmax.f32 %v292, 0.0
  %v317 = vmax.f32 %v293, 0.0
  %v318 = vmax.f32 %v294, 0.0
  %v319 = vmax.f32 %v295, 0.0
  %v320 = vmax.f32 %v296, 0.0
  %v321 = vmax.f32 %v297, 0.0
  %v322 = vpack.c.bf16 %v302, %v298
  %v323 = vpack.c.bf16 %v303, %v299
  %v324 = vpack.c.bf16 %v304, %v300
  %v325 = vpack.c.bf16 %v305, %v301
  %v326 = vpack.c.bf16 %v310, %v306
  %v327 = vpack.c.bf16 %v311, %v307
  %v328 = vpack.c.bf16 %v312, %v308
  %v329 = vpack.c.bf16 %v313, %v309
  %v330 = vpack.c.bf16 %v318, %v314
  %v331 = vpack.c.bf16 %v319, %v315
  %v332 = vpack.c.bf16 %v320, %v316
  %v333 = vpack.c.bf16 %v321, %v317
  %v334 = vld [vmem:[%s3] sm:$0xf]
  %v335 = vld [vmem:[%s3 + $0x4] sm:$0xf]
  %v336 = vld [vmem:[%s3 + $0x8] sm:$0xf]
  %v337 = vld [vmem:[%s3 + $0xc] sm:$0xf]
  %v338 = vld [vmem:[%s3 + $0x10] sm:$0xf]
  %v339 = vld [vmem:[%s3 + $0x14] sm:$0xf]
  %v340 = vld [vmem:[%s3 + $0x18] sm:$0xf]
  %v341 = vld [vmem:[%s3 + $0x1c] sm:$0xf]
  %v342 = vld [vmem:[%s3 + $0x20] sm:$0xf]
  %v343 = vld [vmem:[%s3 + $0x24] sm:$0xf]
  %v344 = vld [vmem:[%s3 + $0x28] sm:$0xf]
  %v345 = vld [vmem:[%s3 + $0x2c] sm:$0xf]
  %v346 = vld [vmem:[%s3 + $0x30] sm:$0xf]
  %v347 = vld [vmem:[%s3 + $0x34] sm:$0xf]
  %v348 = vld [vmem:[%s3 + $0x38] sm:$0xf]
  %v349 = vld [vmem:[%s3 + $0x3c] sm:$0xf]
  %v350 = vld [vmem:[%s3 + $0x40] sm:$0xf]
  %v351 = vld [vmem:[%s3 + $0x44] sm:$0xf]
  %v352 = vld [vmem:[%s3 + $0x48] sm:$0xf]
  %v353 = vld [vmem:[%s3 + $0x4c] sm:$0xf]
  %v354 = vld [vmem:[%s3 + $0x50] sm:$0xf]
  %v355 = vld [vmem:[%s3 + $0x54] sm:$0xf]
  %v356 = vld [vmem:[%s3 + $0x58] sm:$0xf]
  %v357 = vld [vmem:[%s3 + $0x5c] sm:$0xf]
  %v358 = vld [vmem:[%s3 + $0x60] sm:$0xf]
  %v359 = vld [vmem:[%s3 + $0x64] sm:$0xf]
  %v360 = vld [vmem:[%s3 + $0x68] sm:$0xf]
  %v361 = vld [vmem:[%s3 + $0x6c] sm:$0xf]
  %v362 = vld [vmem:[%s3 + $0x70] sm:$0xf]
  %v363 = vld [vmem:[%s3 + $0x74] sm:$0xf]
  %v364 = vld [vmem:[%s3 + $0x78] sm:$0xf]
  %v365 = vld [vmem:[%s3 + $0x7c] sm:$0xf]
  %v366 = vld [vmem:[%s3 + $0x80] sm:$0xf]
  %v367 = vld [vmem:[%s3 + $0x84] sm:$0xf]
  %v368 = vld [vmem:[%s3 + $0x88] sm:$0xf]
  %v369 = vld [vmem:[%s3 + $0x8c] sm:$0xf]
  %v370 = vld [vmem:[%s3 + $0x90] sm:$0xf]
  %v371 = vld [vmem:[%s3 + $0x94] sm:$0xf]
  %v372 = vld [vmem:[%s3 + $0x98] sm:$0xf]
  %v373 = vld [vmem:[%s3 + $0x9c] sm:$0xf]
  %v374 = vld [vmem:[%s3 + $0xa0] sm:$0xf]
  %v375 = vld [vmem:[%s3 + $0xa4] sm:$0xf]
  %v376 = vld [vmem:[%s3 + $0xa8] sm:$0xf]
  %v377 = vld [vmem:[%s3 + $0xac] sm:$0xf]
  %v378 = vld [vmem:[%s3 + $0xb0] sm:$0xf]
  %v379 = vld [vmem:[%s3 + $0xb4] sm:$0xf]
  %v380 = vld [vmem:[%s3 + $0xb8] sm:$0xf]
  %v381 = vld [vmem:[%s3 + $0xbc] sm:$0xf]
  %v382 = vld [vmem:[%s3 + $0xc0] sm:$0xf]
  %v383 = vld [vmem:[%s3 + $0xc4] sm:$0xf]
  %v384 = vld [vmem:[%s3 + $0xc8] sm:$0xf]
  %v385 = vld [vmem:[%s3 + $0xcc] sm:$0xf]
  %v386 = vld [vmem:[%s3 + $0xd0] sm:$0xf]
  %v387 = vld [vmem:[%s3 + $0xd4] sm:$0xf]
  %v388 = vld [vmem:[%s3 + $0xd8] sm:$0xf]
  %v389 = vld [vmem:[%s3 + $0xdc] sm:$0xf]
  %v390 = vld [vmem:[%s3 + $0xe0] sm:$0xf]
  %v391 = vld [vmem:[%s3 + $0xe4] sm:$0xf]
  %v392 = vld [vmem:[%s3 + $0xe8] sm:$0xf]
  %v393 = vld [vmem:[%s3 + $0xec] sm:$0xf]
  %v394 = vld [vmem:[%s3 + $0xf0] sm:$0xf]
  %v395 = vld [vmem:[%s3 + $0xf4] sm:$0xf]
  %v396 = vld [vmem:[%s3 + $0xf8] sm:$0xf]
  %v397 = vld [vmem:[%s3 + $0xfc] sm:$0xf]
  %v398 = vld [vmem:[%s4] sm:$0x1]
  %v400 = vperm.slane %v398, 0
  %v466 = vunpack.c.l.b16 %v334
  %v467 = vunpack.c.l.b16 %v335
  %v468 = vunpack.c.l.b16 %v336
  %v469 = vunpack.c.l.b16 %v337
  %v470 = vunpack.c.l.b16 %v338
  %v471 = vunpack.c.l.b16 %v339
  %v472 = vunpack.c.l.b16 %v340
  %v473 = vunpack.c.l.b16 %v341
  %v474 = vunpack.c.l.b16 %v342
  %v475 = vunpack.c.l.b16 %v343
  %v476 = vunpack.c.l.b16 %v344
  %v477 = vunpack.c.l.b16 %v345
  %v478 = vunpack.c.l.b16 %v346
  %v479 = vunpack.c.l.b16 %v347
  %v480 = vunpack.c.l.b16 %v348
  %v481 = vunpack.c.l.b16 %v349
  %v482 = vunpack.c.l.b16 %v350
  %v483 = vunpack.c.l.b16 %v351
  %v484 = vunpack.c.l.b16 %v352
  %v485 = vunpack.c.l.b16 %v353
  %v486 = vunpack.c.l.b16 %v354
  %v487 = vunpack.c.l.b16 %v355
  %v488 = vunpack.c.l.b16 %v356
  %v489 = vunpack.c.l.b16 %v357
  %v490 = vunpack.c.l.b16 %v358
  %v491 = vunpack.c.l.b16 %v359
  %v492 = vunpack.c.l.b16 %v360
  %v493 = vunpack.c.l.b16 %v361
  %v494 = vunpack.c.l.b16 %v362
  %v495 = vunpack.c.l.b16 %v363
  %v496 = vunpack.c.l.b16 %v364
  %v497 = vunpack.c.l.b16 %v365
  %v498 = vunpack.c.l.b16 %v366
  %v499 = vunpack.c.l.b16 %v367
  %v500 = vunpack.c.l.b16 %v368
  %v501 = vunpack.c.l.b16 %v369
  %v502 = vunpack.c.l.b16 %v370
  %v503 = vunpack.c.l.b16 %v371
  %v504 = vunpack.c.l.b16 %v372
  %v505 = vunpack.c.l.b16 %v373
  %v506 = vunpack.c.l.b16 %v374
  %v507 = vunpack.c.l.b16 %v375
  %v508 = vunpack.c.l.b16 %v376
  %v509 = vunpack.c.l.b16 %v377
  %v510 = vunpack.c.l.b16 %v378
  %v511 = vunpack.c.l.b16 %v379
  %v512 = vunpack.c.l.b16 %v380
  %v513 = vunpack.c.l.b16 %v381
  %v514 = vunpack.c.l.b16 %v382
  %v515 = vunpack.c.l.b16 %v383
  %v516 = vunpack.c.l.b16 %v384
  %v517 = vunpack.c.l.b16 %v385
  %v518 = vunpack.c.l.b16 %v386
  %v519 = vunpack.c.l.b16 %v387
  %v520 = vunpack.c.l.b16 %v388
  %v521 = vunpack.c.l.b16 %v389
  %v522 = vunpack.c.l.b16 %v390
  %v523 = vunpack.c.l.b16 %v391
  %v524 = vunpack.c.l.b16 %v392
  %v525 = vunpack.c.l.b16 %v393
  %v526 = vunpack.c.l.b16 %v394
  %v527 = vunpack.c.l.b16 %v395
  %v528 = vunpack.c.l.b16 %v396
  %v529 = vunpack.c.l.b16 %v397
  %v530 = vpack.c.b16 %v467, %v466
  %v531 = vpack.c.b16 %v469, %v468
  %v532 = vpack.c.b16 %v471, %v470
  %v533 = vpack.c.b16 %v473, %v472
  %v534 = vpack.c.b16 %v475, %v474
  %v535 = vpack.c.b16 %v477, %v476
  %v536 = vpack.c.b16 %v479, %v478
  %v537 = vpack.c.b16 %v481, %v480
  %v538 = vpack.c.b16 %v483, %v482
  %v539 = vpack.c.b16 %v485, %v484
  %v540 = vpack.c.b16 %v487, %v486
  %v541 = vpack.c.b16 %v489, %v488
  %v542 = vpack.c.b16 %v491, %v490
  %v543 = vpack.c.b16 %v493, %v492
  %v544 = vpack.c.b16 %v495, %v494
  %v545 = vpack.c.b16 %v497, %v496
  %v546 = vpack.c.b16 %v499, %v498
  %v547 = vpack.c.b16 %v501, %v500
  %v548 = vpack.c.b16 %v503, %v502
  %v549 = vpack.c.b16 %v505, %v504
  %v550 = vpack.c.b16 %v507, %v506
  %v551 = vpack.c.b16 %v509, %v508
  %v552 = vpack.c.b16 %v511, %v510
  %v553 = vpack.c.b16 %v513, %v512
  %v554 = vpack.c.b16 %v515, %v514
  %v555 = vpack.c.b16 %v517, %v516
  %v556 = vpack.c.b16 %v519, %v518
  %v557 = vpack.c.b16 %v521, %v520
  %v558 = vpack.c.b16 %v523, %v522
  %v559 = vpack.c.b16 %v525, %v524
  %v560 = vpack.c.b16 %v527, %v526
  %v561 = vpack.c.b16 %v529, %v528
  %594 = vmatpush.bf16.msra.mxu0 %v537
  %595 = vmatpush.bf16.msra.mxu0 %v536
  %596 = vmatpush.bf16.msra.mxu0 %v535
  %597 = vmatpush.bf16.msra.mxu0 %v534
  %598 = vmatpush.bf16.msra.mxu0 %v533
  %599 = vmatpush.bf16.msra.mxu0 %v532
  %600 = vmatpush.bf16.msra.mxu0 %v531
  %601 = vmatpush.bf16.msra.mxu0 %v530
  %602 = vmatmul.bf16.gmra.mxu0 %v322
  %v603 = vpop.f32.mrf.mxu0
  %v604 = vadd.f32 %v400, %v603
  %v605 = vpop.f32.mrf.mxu0
  %v606 = vadd.f32 %v400, %v605
  %607 = vmatmul.bf16.gmra.mxu0 %v326
  %v608 = vpop.f32.mrf.mxu0
  %v609 = vadd.f32 %v400, %v608
  %v610 = vpop.f32.mrf.mxu0
  %v611 = vadd.f32 %v400, %v610
  %612 = vmatmul.bf16.gmra.mxu0 %v330
  %v613 = vpop.f32.mrf.mxu0
  %v614 = vadd.f32 %v400, %v613
  %v615 = vpop.f32.mrf.mxu0
  %v616 = vadd.f32 %v400, %v615
  %617 = vdwg.mxu0
  %618 = vmatpush.bf16.msra.mxu0 %v545
  %619 = vmatpush.bf16.msra.mxu0 %v544
  %620 = vmatpush.bf16.msra.mxu0 %v543
  %621 = vmatpush.bf16.msra.mxu0 %v542
  %622 = vmatpush.bf16.msra.mxu0 %v541
  %623 = vmatpush.bf16.msra.mxu0 %v540
  %624 = vmatpush.bf16.msra.mxu0 %v539
  %625 = vmatpush.bf16.msra.mxu0 %v538
  %626 = vmatmul.bf16.gmra.mxu0 %v323
  %v627 = vpop.f32.mrf.mxu0
  %v628 = vadd.f32 %v604, %v627
  %v629 = vpop.f32.mrf.mxu0
  %v630 = vadd.f32 %v606, %v629
  %631 = vmatmul.bf16.gmra.mxu0 %v327
  %v632 = vpop.f32.mrf.mxu0
  %v633 = vadd.f32 %v609, %v632
  %v634 = vpop.f32.mrf.mxu0
  %v635 = vadd.f32 %v611, %v634
  %636 = vmatmul.bf16.gmra.mxu0 %v331
  %v637 = vpop.f32.mrf.mxu0
  %v638 = vadd.f32 %v614, %v637
  %v639 = vpop.f32.mrf.mxu0
  %v640 = vadd.f32 %v616, %v639
  %641 = vdwg.mxu0
  %642 = vmatpush.bf16.msra.mxu0 %v553
  %643 = vmatpush.bf16.msra.mxu0 %v552
  %644 = vmatpush.bf16.msra.mxu0 %v551
  %645 = vmatpush.bf16.msra.mxu0 %v550
  %646 = vmatpush.bf16.msra.mxu0 %v549
  %647 = vmatpush.bf16.msra.mxu0 %v548
  %648 = vmatpush.bf16.msra.mxu0 %v547
  %649 = vmatpush.bf16.msra.mxu0 %v546
  %650 = vmatmul.bf16.gmra.mxu0 %v324
  %v651 = vpop.f32.mrf.mxu0
  %v652 = vadd.f32 %v628, %v651
  %v653 = vpop.f32.mrf.mxu0
  %v654 = vadd.f32 %v630, %v653
  %655 = vmatmul.bf16.gmra.mxu0 %v328
  %v656 = vpop.f32.mrf.mxu0
  %v657 = vadd.f32 %v633, %v656
  %v658 = vpop.f32.mrf.mxu0
  %v659 = vadd.f32 %v635, %v658
  %660 = vmatmul.bf16.gmra.mxu0 %v332
  %v661 = vpop.f32.mrf.mxu0
  %v662 = vadd.f32 %v638, %v661
  %v663 = vpop.f32.mrf.mxu0
  %v664 = vadd.f32 %v640, %v663
  %665 = vdwg.mxu0
  %666 = vmatpush.bf16.msra.mxu0 %v561
  %667 = vmatpush.bf16.msra.mxu0 %v560
  %668 = vmatpush.bf16.msra.mxu0 %v559
  %669 = vmatpush.bf16.msra.mxu0 %v558
  %670 = vmatpush.bf16.msra.mxu0 %v557
  %671 = vmatpush.bf16.msra.mxu0 %v556
  %672 = vmatpush.bf16.msra.mxu0 %v555
  %673 = vmatpush.bf16.msra.mxu0 %v554
  %674 = vmatmul.bf16.gmra.mxu0 %v325
  %v675 = vpop.f32.mrf.mxu0
  %v676 = vadd.f32 %v652, %v675
  %v677 = vpop.f32.mrf.mxu0
  %v678 = vadd.f32 %v654, %v677
  %679 = vmatmul.bf16.gmra.mxu0 %v329
  %v680 = vpop.f32.mrf.mxu0
  %v681 = vadd.f32 %v657, %v680
  %v682 = vpop.f32.mrf.mxu0
  %v683 = vadd.f32 %v659, %v682
  %684 = vmatmul.bf16.gmra.mxu0 %v333
  %v685 = vpop.f32.mrf.mxu0
  %v686 = vadd.f32 %v662, %v685
  %v687 = vpop.f32.mrf.mxu0
  %v688 = vadd.f32 %v664, %v687
  %689 = vdwg.mxu0
  %690 = vst [vmem:[%s5] sm:$0xff] %v676
  %691 = vst [vmem:[%s5 + $0x8] sm:$0xff] %v678
  %692 = vst [vmem:[%s5 + $0x10] sm:$0xff] %v681
  %693 = vst [vmem:[%s5 + $0x18] sm:$0xff] %v683
  %694 = vst [vmem:[%s5 + $0x20] sm:$0xff] %v686
  %695 = vst [vmem:[%s5 + $0x28] sm:$0xf] %v688
  // Predicated region
  $region22: #{unsupervised_detector_forward.2} parent=0 // pred_check
    _
  $region23: #{unsupervised_detector_forward.2} parent=0 // pred_check_branch
    %697 = sbr.rel (0) target = $region25
  $region24: #{unsupervised_detector_forward.2} parent=0 // pred_region
    _
  $region25: #{unsupervised_detector_forward.2} parent=0 // pred_fallthru
    _
  // Predicated region
  $region26: #{unsupervised_detector_forward.2} parent=0 // pred_check
    _
  $region27: #{unsupervised_detector_forward.2} parent=0 // pred_check_branch
    %699 = sbr.rel (0) target = $region29
  $region28: #{unsupervised_detector_forward.2} parent=0 // pred_region
    _
  $region29: #{unsupervised_detector_forward.2} parent=0 // pred_fallthru
    _

// kernel: unsupervised_detector_forward.3
$region0: #{unsupervised_detector_forward.3}
  #allocation0 [shape = 'u32[]', space=smem, size = 0x4, offset = 0x4, fixed_abs, tag = 'smem constant byte address 0x4 - core index']
  #allocation1 [shape = 'u32[72,128]{1,0:T(1,128)}', space=vmem, size = 0x9000, scoped, tag = 'internal scratch']
  %s0 = inlined_call_operand.vmem [shape: f32[2,3], index: 0, kind: input, shape index: {}]
  %s1 = inlined_call_operand.vmem [shape: f32[3,512], index: 1, kind: input, shape index: {}]
  %s2 = inlined_call_operand.vmem [shape: f32[1,512], index: 2, kind: input, shape index: {}]
  %s3 = inlined_call_operand.vmem [shape: bf16[512,128], index: 3, kind: input, shape index: {}]
  %s4 = inlined_call_operand.vmem [shape: f32[1,128], index: 4, kind: input, shape index: {}]
  %s5 = inlined_call_operand.vmem [shape: f32[2,128], index: 5, kind: input, shape index: {}]
  %s6 = inlined_call_operand.vmem [shape: f32[2,10,128], index: 6, kind: input, shape index: {}]
  %s7 = inlined_call_operand.hbm [shape: f32[1,1], index: 7, kind: output, shape index: {}]
  %s8 = sld [smem:[#allocation0]]
  $region38: #{unsupervised_detector_forward.3} parent=0
    _
  %s10 = ssub.s32 1, %s8
  %s11 = scalar_select 0, %s10, %s8
  $region1: #{unsupervised_detector_forward.3} parent=0
    #allocation2 [shape = 'u8[512]{0}', space=smem, size = 0x200, scoped, tag = 'output window, operand 0, single buffered']
    #allocation3 [shape = 's32[1]{0}', space=sflag, size = 0x4, scoped, tag = 'scoped memory for unsupervised_detector_forward.3']
    %12 = vsyncpa [#allocation3], 0
    // Predicated region
    $region2: #{unsupervised_detector_forward.3} parent=1 // pred_check
      _
    $region3: #{unsupervised_detector_forward.3} parent=1 // pred_check_branch
      %14 = sbr.rel (0) target = $region5
    $region4: #{unsupervised_detector_forward.3} parent=1 // pred_region
      _
    $region5: #{unsupervised_detector_forward.3} parent=1 // pred_fallthru
      _
    // Predicated region
    $region6: #{unsupervised_detector_forward.3} parent=1 // pred_check
      _
    $region7: #{unsupervised_detector_forward.3} parent=1 // pred_check_branch
      %16 = sbr.rel (0) target = $region9
    $region8: #{unsupervised_detector_forward.3} parent=1 // pred_region
      _
    $region9: #{unsupervised_detector_forward.3} parent=1 // pred_fallthru
      _
    // Predicated region
    $region10: #{unsupervised_detector_forward.3} parent=1 // pred_check
      _
    $region11: #{unsupervised_detector_forward.3} parent=1 // pred_check_branch
      %18 = sbr.rel (0) target = $region13
    $region12: #{unsupervised_detector_forward.3} parent=1 // pred_region
      _
    $region13: #{unsupervised_detector_forward.3} parent=1 // pred_fallthru
      _
    // Predicated region
    $region14: #{unsupervised_detector_forward.3} parent=1 // pred_check
      _
    $region15: #{unsupervised_detector_forward.3} parent=1 // pred_check_branch
      %20 = sbr.rel (0) target = $region17
    $region16: #{unsupervised_detector_forward.3} parent=1 // pred_region
      _
    $region17: #{unsupervised_detector_forward.3} parent=1 // pred_fallthru
      _
    // Predicated region
    $region18: #{unsupervised_detector_forward.3} parent=1 // pred_check
      _
    $region19: #{unsupervised_detector_forward.3} parent=1 // pred_check_branch
      %22 = sbr.rel (0) target = $region21
    $region20: #{unsupervised_detector_forward.3} parent=1 // pred_region
      _
    $region21: #{unsupervised_detector_forward.3} parent=1 // pred_fallthru
      _
    // Predicated region
    $region22: #{unsupervised_detector_forward.3} parent=1 // pred_check
      _
    $region23: #{unsupervised_detector_forward.3} parent=1 // pred_check_branch
      %24 = sbr.rel (0) target = $region25
    $region24: #{unsupervised_detector_forward.3} parent=1 // pred_region
      _
    $region25: #{unsupervised_detector_forward.3} parent=1 // pred_fallthru
      _
    // Predicated region
    $region26: #{unsupervised_detector_forward.3} parent=1 // pred_check
      _
    $region27: #{unsupervised_detector_forward.3} parent=1 // pred_check_branch
      %26 = sbr.rel (0) target = $region29
    $region28: #{unsupervised_detector_forward.3} parent=1 // pred_region
      _
    $region29: #{unsupervised_detector_forward.3} parent=1 // pred_fallthru
      _
    %v27 = vld [vmem:[%s0] sm:$0x3]
    %v28 = vld [vmem:[%s1] sm:$0x77]
    %v29 = vld [vmem:[%s1 + $0x8] sm:$0x77]
    %v30 = vld [vmem:[%s2] sm:$0xf]
    %32 = vset.pattern.permute.xlu0 0
    %33 = vperm.xlu0 %32, %v27
    %v34 = vpop.permute.xlu0 %33
    %v38 = vperm.slane %v28, 0
    %v39 = vperm.slane %v28, 4
    %v40 = vperm.slane %v29, 0
    %v41 = vperm.slane %v29, 4
    %v46 = vperm.slane %v38, 0
    %v47 = vperm.slane %v39, 0
    %v48 = vperm.slane %v40, 0
    %v49 = vperm.slane %v41, 0
    %v50 = vmul.f32 %v34, %v46
    %v51 = vmul.f32 %v34, %v47
    %v52 = vmul.f32 %v34, %v48
    %v53 = vmul.f32 %v34, %v49
    %v55 = vperm.slane %v30, 0
    %v56 = vperm.slane %v30, 1
    %v57 = vperm.slane %v30, 2
    %v58 = vperm.slane %v30, 3
    %v63 = vadd.f32 %v55, %v50
    %v64 = vadd.f32 %v56, %v51
    %v65 = vadd.f32 %v57, %v52
    %v66 = vadd.f32 %v58, %v53
    %67 = vset.pattern.permute.xlu0 1
    %68 = vperm.xlu0 %67, %v27
    %v69 = vpop.permute.xlu0 %68
    %v71 = vperm.slane %v28, 1
    %v72 = vperm.slane %v28, 5
    %v73 = vperm.slane %v29, 1
    %v74 = vperm.slane %v29, 5
    %v79 = vperm.slane %v71, 1
    %v80 = vperm.slane %v72, 1
    %v81 = vperm.slane %v73, 1
    %v82 = vperm.slane %v74, 1
    %v83 = vmul.f32 %v69, %v79
    %v84 = vmul.f32 %v69, %v80
    %v85 = vmul.f32 %v69, %v81
    %v86 = vmul.f32 %v69, %v82
    %v87 = vadd.f32 %v63, %v83
    %v88 = vadd.f32 %v64, %v84
    %v89 = vadd.f32 %v65, %v85
    %v90 = vadd.f32 %v66, %v86
    %91 = vset.pattern.permute.xlu0 2
    %92 = vperm.xlu0 %91, %v27
    %v93 = vpop.permute.xlu0 %92
    %v95 = vperm.slane %v28, 2
    %v96 = vperm.slane %v28, 6
    %v97 = vperm.slane %v29, 2
    %v98 = vperm.slane %v29, 6
    %v103 = vperm.slane %v95, 2
    %v104 = vperm.slane %v96, 2
    %v105 = vperm.slane %v97, 2
    %v106 = vperm.slane %v98, 2
    %v107 = vmul.f32 %v93, %v103
    %v108 = vmul.f32 %v93, %v104
    %v109 = vmul.f32 %v93, %v105
    %v110 = vmul.f32 %v93, %v106
    %v111 = vadd.f32 %v87, %v107
    %v112 = vadd.f32 %v88, %v108
    %v113 = vadd.f32 %v89, %v109
    %v114 = vadd.f32 %v90, %v110
    %v115 = vmax.f32 %v111, 0.0
    %v116 = vmax.f32 %v112, 0.0
    %v117 = vmax.f32 %v113, 0.0
    %v118 = vmax.f32 %v114, 0.0
    %v119 = vpack.c.bf16 %v115, %v115
    %v120 = vpack.c.bf16 %v116, %v116
    %v121 = vpack.c.bf16 %v117, %v117
    %v122 = vpack.c.bf16 %v118, %v118
    %v123 = vld [vmem:[%s3] sm:$0xf]
    %v124 = vld [vmem:[%s3 + $0x4] sm:$0xf]
    %v125 = vld [vmem:[%s3 + $0x8] sm:$0xf]
    %v126 = vld [vmem:[%s3 + $0xc] sm:$0xf]
    %v127 = vld [vmem:[%s3 + $0x10] sm:$0xf]
    %v128 = vld [vmem:[%s3 + $0x14] sm:$0xf]
    %v129 = vld [vmem:[%s3 + $0x18] sm:$0xf]
    %v130 = vld [vmem:[%s3 + $0x1c] sm:$0xf]
    %v131 = vld [vmem:[%s3 + $0x20] sm:$0xf]
    %v132 = vld [vmem:[%s3 + $0x24] sm:$0xf]
    %v133 = vld [vmem:[%s3 + $0x28] sm:$0xf]
    %v134 = vld [vmem:[%s3 + $0x2c] sm:$0xf]
    %v135 = vld [vmem:[%s3 + $0x30] sm:$0xf]
    %v136 = vld [vmem:[%s3 + $0x34] sm:$0xf]
    %v137 = vld [vmem:[%s3 + $0x38] sm:$0xf]
    %v138 = vld [vmem:[%s3 + $0x3c] sm:$0xf]
    %v139 = vld [vmem:[%s3 + $0x40] sm:$0xf]
    %v140 = vld [vmem:[%s3 + $0x44] sm:$0xf]
    %v141 = vld [vmem:[%s3 + $0x48] sm:$0xf]
    %v142 = vld [vmem:[%s3 + $0x4c] sm:$0xf]
    %v143 = vld [vmem:[%s3 + $0x50] sm:$0xf]
    %v144 = vld [vmem:[%s3 + $0x54] sm:$0xf]
    %v145 = vld [vmem:[%s3 + $0x58] sm:$0xf]
    %v146 = vld [vmem:[%s3 + $0x5c] sm:$0xf]
    %v147 = vld [vmem:[%s3 + $0x60] sm:$0xf]
    %v148 = vld [vmem:[%s3 + $0x64] sm:$0xf]
    %v149 = vld [vmem:[%s3 + $0x68] sm:$0xf]
    %v150 = vld [vmem:[%s3 + $0x6c] sm:$0xf]
    %v151 = vld [vmem:[%s3 + $0x70] sm:$0xf]
    %v152 = vld [vmem:[%s3 + $0x74] sm:$0xf]
    %v153 = vld [vmem:[%s3 + $0x78] sm:$0xf]
    %v154 = vld [vmem:[%s3 + $0x7c] sm:$0xf]
    %v155 = vld [vmem:[%s3 + $0x80] sm:$0xf]
    %v156 = vld [vmem:[%s3 + $0x84] sm:$0xf]
    %v157 = vld [vmem:[%s3 + $0x88] sm:$0xf]
    %v158 = vld [vmem:[%s3 + $0x8c] sm:$0xf]
    %v159 = vld [vmem:[%s3 + $0x90] sm:$0xf]
    %v160 = vld [vmem:[%s3 + $0x94] sm:$0xf]
    %v161 = vld [vmem:[%s3 + $0x98] sm:$0xf]
    %v162 = vld [vmem:[%s3 + $0x9c] sm:$0xf]
    %v163 = vld [vmem:[%s3 + $0xa0] sm:$0xf]
    %v164 = vld [vmem:[%s3 + $0xa4] sm:$0xf]
    %v165 = vld [vmem:[%s3 + $0xa8] sm:$0xf]
    %v166 = vld [vmem:[%s3 + $0xac] sm:$0xf]
    %v167 = vld [vmem:[%s3 + $0xb0] sm:$0xf]
    %v168 = vld [vmem:[%s3 + $0xb4] sm:$0xf]
    %v169 = vld [vmem:[%s3 + $0xb8] sm:$0xf]
    %v170 = vld [vmem:[%s3 + $0xbc] sm:$0xf]
    %v171 = vld [vmem:[%s3 + $0xc0] sm:$0xf]
    %v172 = vld [vmem:[%s3 + $0xc4] sm:$0xf]
    %v173 = vld [vmem:[%s3 + $0xc8] sm:$0xf]
    %v174 = vld [vmem:[%s3 + $0xcc] sm:$0xf]
    %v175 = vld [vmem:[%s3 + $0xd0] sm:$0xf]
    %v176 = vld [vmem:[%s3 + $0xd4] sm:$0xf]
    %v177 = vld [vmem:[%s3 + $0xd8] sm:$0xf]
    %v178 = vld [vmem:[%s3 + $0xdc] sm:$0xf]
    %v179 = vld [vmem:[%s3 + $0xe0] sm:$0xf]
    %v180 = vld [vmem:[%s3 + $0xe4] sm:$0xf]
    %v181 = vld [vmem:[%s3 + $0xe8] sm:$0xf]
    %v182 = vld [vmem:[%s3 + $0xec] sm:$0xf]
    %v183 = vld [vmem:[%s3 + $0xf0] sm:$0xf]
    %v184 = vld [vmem:[%s3 + $0xf4] sm:$0xf]
    %v185 = vld [vmem:[%s3 + $0xf8] sm:$0xf]
    %v186 = vld [vmem:[%s3 + $0xfc] sm:$0xf]
    %v187 = vld [vmem:[%s4] sm:$0x1]
    %v189 = vperm.slane %v187, 0
    %v255 = vunpack.c.l.b16 %v123
    %v256 = vunpack.c.l.b16 %v124
    %v257 = vunpack.c.l.b16 %v125
    %v258 = vunpack.c.l.b16 %v126
    %v259 = vunpack.c.l.b16 %v127
    %v260 = vunpack.c.l.b16 %v128
    %v261 = vunpack.c.l.b16 %v129
    %v262 = vunpack.c.l.b16 %v130
    %v263 = vunpack.c.l.b16 %v131
    %v264 = vunpack.c.l.b16 %v132
    %v265 = vunpack.c.l.b16 %v133
    %v266 = vunpack.c.l.b16 %v134
    %v267 = vunpack.c.l.b16 %v135
    %v268 = vunpack.c.l.b16 %v136
    %v269 = vunpack.c.l.b16 %v137
    %v270 = vunpack.c.l.b16 %v138
    %v271 = vunpack.c.l.b16 %v139
    %v272 = vunpack.c.l.b16 %v140
    %v273 = vunpack.c.l.b16 %v141
    %v274 = vunpack.c.l.b16 %v142
    %v275 = vunpack.c.l.b16 %v143
    %v276 = vunpack.c.l.b16 %v144
    %v277 = vunpack.c.l.b16 %v145
    %v278 = vunpack.c.l.b16 %v146
    %v279 = vunpack.c.l.b16 %v147
    %v280 = vunpack.c.l.b16 %v148
    %v281 = vunpack.c.l.b16 %v149
    %v282 = vunpack.c.l.b16 %v150
    %v283 = vunpack.c.l.b16 %v151
    %v284 = vunpack.c.l.b16 %v152
    %v285 = vunpack.c.l.b16 %v153
    %v286 = vunpack.c.l.b16 %v154
    %v287 = vunpack.c.l.b16 %v155
    %v288 = vunpack.c.l.b16 %v156
    %v289 = vunpack.c.l.b16 %v157
    %v290 = vunpack.c.l.b16 %v158
    %v291 = vunpack.c.l.b16 %v159
    %v292 = vunpack.c.l.b16 %v160
    %v293 = vunpack.c.l.b16 %v161
    %v294 = vunpack.c.l.b16 %v162
    %v295 = vunpack.c.l.b16 %v163
    %v296 = vunpack.c.l.b16 %v164
    %v297 = vunpack.c.l.b16 %v165
    %v298 = vunpack.c.l.b16 %v166
    %v299 = vunpack.c.l.b16 %v167
    %v300 = vunpack.c.l.b16 %v168
    %v301 = vunpack.c.l.b16 %v169
    %v302 = vunpack.c.l.b16 %v170
    %v303 = vunpack.c.l.b16 %v171
    %v304 = vunpack.c.l.b16 %v172
    %v305 = vunpack.c.l.b16 %v173
    %v306 = vunpack.c.l.b16 %v174
    %v307 = vunpack.c.l.b16 %v175
    %v308 = vunpack.c.l.b16 %v176
    %v309 = vunpack.c.l.b16 %v177
    %v310 = vunpack.c.l.b16 %v178
    %v311 = vunpack.c.l.b16 %v179
    %v312 = vunpack.c.l.b16 %v180
    %v313 = vunpack.c.l.b16 %v181
    %v314 = vunpack.c.l.b16 %v182
    %v315 = vunpack.c.l.b16 %v183
    %v316 = vunpack.c.l.b16 %v184
    %v317 = vunpack.c.l.b16 %v185
    %v318 = vunpack.c.l.b16 %v186
    %v319 = vpack.c.b16 %v256, %v255
    %v320 = vpack.c.b16 %v258, %v257
    %v321 = vpack.c.b16 %v260, %v259
    %v322 = vpack.c.b16 %v262, %v261
    %v323 = vpack.c.b16 %v264, %v263
    %v324 = vpack.c.b16 %v266, %v265
    %v325 = vpack.c.b16 %v268, %v267
    %v326 = vpack.c.b16 %v270, %v269
    %v327 = vpack.c.b16 %v272, %v271
    %v328 = vpack.c.b16 %v274, %v273
    %v329 = vpack.c.b16 %v276, %v275
    %v330 = vpack.c.b16 %v278, %v277
    %v331 = vpack.c.b16 %v280, %v279
    %v332 = vpack.c.b16 %v282, %v281
    %v333 = vpack.c.b16 %v284, %v283
    %v334 = vpack.c.b16 %v286, %v285
    %v335 = vpack.c.b16 %v288, %v287
    %v336 = vpack.c.b16 %v290, %v289
    %v337 = vpack.c.b16 %v292, %v291
    %v338 = vpack.c.b16 %v294, %v293
    %v339 = vpack.c.b16 %v296, %v295
    %v340 = vpack.c.b16 %v298, %v297
    %v341 = vpack.c.b16 %v300, %v299
    %v342 = vpack.c.b16 %v302, %v301
    %v343 = vpack.c.b16 %v304, %v303
    %v344 = vpack.c.b16 %v306, %v305
    %v345 = vpack.c.b16 %v308, %v307
    %v346 = vpack.c.b16 %v310, %v309
    %v347 = vpack.c.b16 %v312, %v311
    %v348 = vpack.c.b16 %v314, %v313
    %v349 = vpack.c.b16 %v316, %v315
    %v350 = vpack.c.b16 %v318, %v317
    %383 = vmatpush.bf16.msra.mxu0 %v326
    %384 = vmatpush.bf16.msra.mxu0 %v325
    %385 = vmatpush.bf16.msra.mxu0 %v324
    %386 = vmatpush.bf16.msra.mxu0 %v323
    %387 = vmatpush.bf16.msra.mxu0 %v322
    %388 = vmatpush.bf16.msra.mxu0 %v321
    %389 = vmatpush.bf16.msra.mxu0 %v320
    %390 = vmatpush.bf16.msra.mxu0 %v319
    %391 = vmatmul.bf16.gmra.mxu0 %v119
    %v392 = vpop.f32.mrf.mxu0
    %v393 = vadd.f32 %v189, %v392
    %v394 = vpop.f32.mrf.mxu0
    %395 = vdwg.mxu0
    %396 = vmatpush.bf16.msra.mxu0 %v334
    %397 = vmatpush.bf16.msra.mxu0 %v333
    %398 = vmatpush.bf16.msra.mxu0 %v332
    %399 = vmatpush.bf16.msra.mxu0 %v331
    %400 = vmatpush.bf16.msra.mxu0 %v330
    %401 = vmatpush.bf16.msra.mxu0 %v329
    %402 = vmatpush.bf16.msra.mxu0 %v328
    %403 = vmatpush.bf16.msra.mxu0 %v327
    %404 = vmatmul.bf16.gmra.mxu0 %v120
    %v405 = vpop.f32.mrf.mxu0
    %v406 = vadd.f32 %v393, %v405
    %v407 = vpop.f32.mrf.mxu0
    %408 = vdwg.mxu0
    %409 = vmatpush.bf16.msra.mxu0 %v342
    %410 = vmatpush.bf16.msra.mxu0 %v341
    %411 = vmatpush.bf16.msra.mxu0 %v340
    %412 = vmatpush.bf16.msra.mxu0 %v339
    %413 = vmatpush.bf16.msra.mxu0 %v338
    %414 = vmatpush.bf16.msra.mxu0 %v337
    %415 = vmatpush.bf16.msra.mxu0 %v336
    %416 = vmatpush.bf16.msra.mxu0 %v335
    %417 = vmatmul.bf16.gmra.mxu0 %v121
    %v418 = vpop.f32.mrf.mxu0
    %v419 = vadd.f32 %v406, %v418
    %v420 = vpop.f32.mrf.mxu0
    %421 = vdwg.mxu0
    %422 = vmatpush.bf16.msra.mxu0 %v350
    %423 = vmatpush.bf16.msra.mxu0 %v349
    %424 = vmatpush.bf16.msra.mxu0 %v348
    %425 = vmatpush.bf16.msra.mxu0 %v347
    %426 = vmatpush.bf16.msra.mxu0 %v346
    %427 = vmatpush.bf16.msra.mxu0 %v345
    %428 = vmatpush.bf16.msra.mxu0 %v344
    %429 = vmatpush.bf16.msra.mxu0 %v343
    %430 = vmatmul.bf16.gmra.mxu0 %v122
    %v431 = vpop.f32.mrf.mxu0
    %v432 = vadd.f32 %v419, %v431
    %v433 = vpop.f32.mrf.mxu0
    %434 = vdwg.mxu0
    %v435 = vld [vmem:[%s5] sm:$0x3]
    %v436 = vld [vmem:[%s6] sm:$0xff]
    %v437 = vld [vmem:[%s6 + $0x8] sm:$0x3]
    %v438 = vld [vmem:[%s6 + $0x10] sm:$0xff]
    %v439 = vld [vmem:[%s6 + $0x18] sm:$0x3]
    %v440 = vmul.f32 %v432, %v432
    %vm441 = vcmask 1041408
    %v442 = vsel %vm441, %v440, 0.0
    %443 = vadd.xlane.f32.xlu0 %v442
    %v444 = vpop.xlane.xlu0 %443
    %v445 = vmax.f32 %v444, 1e-24
    %v446 = vrsqrt.pop %v445
    %v447 = vmul.f32 %v446, %v445
    %v448 = vmul.f32 %v447, %v446
    %v449 = vmul.f32 0.5, %v448
    %v450 = vsub.f32 1.5, %v449
    %v451 = vmul.f32 %v446, %v450
    %vm452 = vweird.f32 %v445
    %vm453 = vweird.f32 %v446
    %vm454 = vmor %vm452, %vm453
    %v455 = vsel %vm454, %v446, %v451
    %v456 = vmul.f32 %v432, %v455
    %v457 = vmul.f32 %v435, %v435
    %v458 = vsel %vm441, %v457, 0.0
    %459 = vadd.xlane.f32.xlu0 %v458
    %v460 = vpop.xlane.xlu0 %459
    %v461 = vmax.f32 %v460, 1e-24
    %v462 = vrsqrt.pop %v461
    %v463 = vmul.f32 %v462, %v461
    %v464 = vmul.f32 %v463, %v462
    %v465 = vmul.f32 0.5, %v464
    %v466 = vsub.f32 1.5, %v465
    %v467 = vmul.f32 %v462, %v466
    %vm468 = vweird.f32 %v461
    %vm469 = vweird.f32 %v462
    %vm470 = vmor %vm468, %vm469
    %v471 = vsel %vm470, %v462, %v467
    %v472 = vmul.f32 %v435, %v471
    %v473 = vmul.f32 %v436, %v436
    %v474 = vmul.f32 %v437, %v437
    %v475 = vmul.f32 %v438, %v438
    %v476 = vmul.f32 %v439, %v439
    %477 = vadd.xlane.f32.xlu0 %v473
    %v478 = vpop.xlane.xlu0 %477
    %v479 = vsel %vm441, %v474, 0.0
    %480 = vadd.xlane.f32.xlu0 %v479
    %v481 = vpop.xlane.xlu0 %480
    %482 = vadd.xlane.f32.xlu0 %v475
    %v483 = vpop.xlane.xlu0 %482
    %v484 = vsel %vm441, %v476, 0.0
    %485 = vadd.xlane.f32.xlu0 %v484
    %v486 = vpop.xlane.xlu0 %485
    %v487 = vmax.f32 %v478, 1e-24
    %v488 = vmax.f32 %v481, 1e-24
    %v489 = vmax.f32 %v483, 1e-24
    %v490 = vmax.f32 %v486, 1e-24
    %v491 = vrsqrt.pop %v487
    %v492 = vmul.f32 %v491, %v487
    %v493 = vmul.f32 %v492, %v491
    %v494 = vmul.f32 0.5, %v493
    %v495 = vsub.f32 1.5, %v494
    %v496 = vmul.f32 %v491, %v495
    %vm497 = vweird.f32 %v487
    %vm498 = vweird.f32 %v491
    %vm499 = vmor %vm497, %vm498
    %v500 = vsel %vm499, %v491, %v496
    %v501 = vrsqrt.pop %v488
    %v502 = vmul.f32 %v501, %v488
    %v503 = vmul.f32 %v502, %v501
    %v504 = vmul.f32 0.5, %v503
    %v505 = vsub.f32 1.5, %v504
    %v506 = vmul.f32 %v501, %v505
    %vm507 = vweird.f32 %v488
    %vm508 = vweird.f32 %v501
    %vm509 = vmor %vm507, %vm508
    %v510 = vsel %vm509, %v501, %v506
    %v511 = vrsqrt.pop %v489
    %v512 = vmul.f32 %v511, %v489
    %v513 = vmul.f32 %v512, %v511
    %v514 = vmul.f32 0.5, %v513
    %v515 = vsub.f32 1.5, %v514
    %v516 = vmul.f32 %v511, %v515
    %vm517 = vweird.f32 %v489
    %vm518 = vweird.f32 %v511
    %vm519 = vmor %vm517, %vm518
    %v520 = vsel %vm519, %v511, %v516
    %v521 = vrsqrt.pop %v490
    %v522 = vmul.f32 %v521, %v490
    %v523 = vmul.f32 %v522, %v521
    %v524 = vmul.f32 0.5, %v523
    %v525 = vsub.f32 1.5, %v524
    %v526 = vmul.f32 %v521, %v525
    %vm527 = vweird.f32 %v490
    %vm528 = vweird.f32 %v521
    %vm529 = vmor %vm527, %vm528
    %v530 = vsel %vm529, %v521, %v526
    %v531 = vmul.f32 %v436, %v500
    %v532 = vmul.f32 %v437, %v510
    %v533 = vmul.f32 %v438, %v520
    %v534 = vmul.f32 %v439, %v530
    %v535 = vmul.f32 %v456, %v472
    %v536 = vsel %vm441, %v535, 0.0
    %537 = vadd.xlane.f32.xlu0 %v536
    %v538 = vpop.xlane.xlu0 %537
    %v539 = vmul.f32 %v538, 10.0
    %540 = vmatpush.xpose.msra.mxu0 0.0
    %541 = vmatpush.xpose.msra.mxu0 0.0
    %542 = vmatpush.xpose.msra.mxu0 0.0
    %543 = vmatpush.xpose.msra.mxu0 0.0
    %544 = vmatpush.xpose.msra.mxu0 0.0
    %545 = vmatpush.xpose.msra.mxu0 0.0
    %546 = vmatpush.xpose.msra.mxu0 0.0
    %547 = vmatpush.xpose.msra.mxu0 0.0
    %548 = vmatpush.xpose.msra.mxu0 0.0
    %549 = vmatpush.xpose.msra.mxu0 0.0
    %550 = vmatpush.xpose.msra.mxu0 0.0
    %551 = vmatpush.xpose.msra.mxu0 0.0
    %552 = vmatpush.xpose.msra.mxu0 0.0
    %553 = vmatpush.xpose.msra.mxu0 0.0
    %554 = vmatpush.xpose.msra.mxu0 0.0
    %555 = vmatpush.xpose.msra.mxu0 %v472
    %556 = vmatmul.f32.gmra.mxu0 %v456
    %v557 = vpop.f32.mrf.mxu0
    %v558 = vadd.f32 0.0, %v557
    %559 = vdwg.mxu0
    %v560 = vmul.f32 %v558, 10.0
    %v562 = vrot.slane %v456, 1
    %v563 = vperm.slane %v456, 0
    %v564 = vperm.slane %v562, 0
    %v567 = vmul.f32 %v563, %v531
    %v568 = vmul.f32 %v563, %v532
    %v569 = vmul.f32 %v564, %v533
    %v570 = vmul.f32 %v564, %v534
    %571 = vadd.xlane.f32.xlu0 %v567
    %v572 = vpop.xlane.xlu0 %571
    %v573 = vsel %vm441, %v568, 0.0
    %574 = vadd.xlane.f32.xlu0 %v573
    %v575 = vpop.xlane.xlu0 %574
    %576 = vadd.xlane.f32.xlu0 %v569
    %v577 = vpop.xlane.xlu0 %576
    %v578 = vsel %vm441, %v570, 0.0
    %579 = vadd.xlane.f32.xlu0 %v578
    %v580 = vpop.xlane.xlu0 %579
    %v581 = vmul.f32 %v572, 10.0
    %v582 = vmul.f32 %v575, 10.0
    %v583 = vmul.f32 %v577, 10.0
    %v584 = vmul.f32 %v580, 10.0
    %v585 = vlaneseq
    %v586 = vshrl.u32 %v585, 7
    %v587 = vlaneseq
    %v588 = vand.u32 %v587, 127
    %vm589 = vcmp.eq.s32.totalorder %v586, %v588
    %v590 = vsel %vm589, -1e+30, %v560
    %vm591 = vcmask 9216
    %v592 = vsel %vm591, %v590, -inf
    %593 = vmax.xlane.f32.xlu0 %v592
    %v594 = vpop.xlane.xlu0 %593
    %v595 = vmax.f32 %v539, %v594
    %v600 = vperm.slane %v581, %v588
    %v601 = vadd.s32 %v588, 4294967288
    %v602 = vperm.slane %v582, %v601
    %vm603 = vcmask 130112
    %v604 = vsel %vm603, %v602, %v600
    %v605 = vperm.slane %v583, %v588
    %v606 = vperm.slane %v584, %v601
    %v607 = vsel %vm603, %v606, %v605
    %vm608 = vcmask 1041409
    %v609 = vsel %vm608, %v607, %v604
    %vm611 = vcmask 74752
    %v612 = vsel %vm611, %v609, -inf
    %613 = vmax.xlane.f32.xlu0 %v612
    %v614 = vpop.xlane.xlu0 %613
    %v615 = vmax.f32 %v595, %v614
    %v616 = vsub.f32 %v539, %v615
    %v617 = vmul.f32 %v616, 1.442695
    %v618 = vpow.pop %v617
    %v619 = vsub.f32 %v590, %v615
    %v620 = vmul.f32 %v619, 1.442695
    %v621 = vpow.pop %v620
    %v622 = vsel %vm591, %v621, 0.0
    %623 = vadd.xlane.f32.xlu0 %v622
    %v624 = vpop.xlane.xlu0 %623
    %v625 = vadd.f32 %v618, %v624
    %v627 = vperm.slane %v615, 0
    %v628 = vperm.slane %v615, 1
    %v631 = vsub.f32 %v581, %v627
    %v632 = vsub.f32 %v582, %v627
    %v633 = vsub.f32 %v583, %v628
    %v634 = vsub.f32 %v584, %v628
    %v635 = vmul.f32 %v631, 1.442695
    %v636 = vpow.pop %v635
    %v637 = vmul.f32 %v632, 1.442695
    %v638 = vpow.pop %v637
    %v639 = vmul.f32 %v633, 1.442695
    %v640 = vpow.pop %v639
    %v641 = vmul.f32 %v634, 1.442695
    %v642 = vpow.pop %v641
    %647 = vset.pattern.permute.xlu0 0
    %648 = vperm.xlu0 %647, %v636
    %v649 = vpop.permute.xlu0 %648
    %650 = vset.pattern.permute.xlu0 0
    %651 = vperm.xlu0 %650, %v638
    %v652 = vpop.permute.xlu0 %651
    %653 = vset.pattern.permute.xlu0 0
    %654 = vperm.xlu0 %653, %v640
    %v655 = vpop.permute.xlu0 %654
    %656 = vset.pattern.permute.xlu0 0
    %657 = vperm.xlu0 %656, %v642
    %v658 = vpop.permute.xlu0 %657
    %v659 = vperm.slane %v649, %v588
    %v660 = vperm.slane %v652, %v601
    %v661 = vsel %vm603, %v660, %v659
    %v662 = vperm.slane %v655, %v588
    %v663 = vperm.slane %v658, %v601
    %v664 = vsel %vm603, %v663, %v662
    %v665 = vsel %vm608, %v664, %v661
    %v667 = vsel %vm611, %v665, 0.0
    %668 = vadd.xlane.f32.xlu0 %v667
    %v669 = vpop.xlane.xlu0 %668
    %v670 = vadd.f32 %v625, %v669
    %v671 = vlog2.pop %v670
    %v672 = vmul.f32 %v671, 0.6931472
    %v673 = vadd.f32 %v672, %v615
    %v674 = vsub.f32 %v673, %v539
    %vm675 = vcmask 1024
    %v676 = vsel %vm675, %v674, 0.0
    %677 = vadd.xlane.f32.xlu0 %v676
    %v678 = vpop.xlane.xlu0 %677
    %v679 = vrot.slane %v678, 4
    %v680 = vadd.f32 %v678, %v679
    %v681 = vrot.slane %v680, 2
    %v682 = vadd.f32 %v680, %v681
    %v683 = vrot.slane %v682, 1
    %v684 = vadd.f32 %v682, %v683
    %s685 = vtos %v684
    %v686 = vrcp.pop 2.0
    %v687 = vmul.f32 2.0, %v686
    %v688 = vsub.f32 1.0, %v687
    %v689 = vmul.f32 %v686, %v688
    %v690 = vadd.f32 %v686, %v689
    %vm691 = vweird.f32 %v686
    %v692 = vsel %vm691, %v686, %v690
    %s693 = vtos %v692
    %s694 = smul.f32 %s685, %s693
    %s695 = scalar_lea.smem [#allocation2], 0
    %696 = sst [smem:[%s695]] %s694
    // Predicated region
    $region30: #{unsupervised_detector_forward.3} parent=1 // pred_check
      _
    $region31: #{unsupervised_detector_forward.3} parent=1 // pred_check_branch
      %698 = sbr.rel (0) target = $region33
    $region32: #{unsupervised_detector_forward.3} parent=1 // pred_region
      %700 = vsyncadd [#allocation3], 0
      %s702 = sshll.u32 %s7, 4
      %s703 = int_to_ptr.hbm [resolvable:$true] %s702
      %705 = dma.smem_to_hbm [#allocation2], 16, %s703, [#allocation3]
    $region33: #{unsupervised_detector_forward.3} parent=1 // pred_fallthru
      _
    // Predicated region
    $region34: #{unsupervised_detector_forward.3} parent=1 // pred_check
      _
    $region35: #{unsupervised_detector_forward.3} parent=1 // pred_check_branch
      %707 = sbr.rel (0) target = $region37
    $region36: #{unsupervised_detector_forward.3} parent=1 // pred_region
      %709 = dma.done [#allocation3], 16
    $region37: #{unsupervised_detector_forward.3} parent=1 // pred_fallthru
      _
    %710 = sfence
    %711 = vsyncpa [#allocation3], 1

</llo_original>
